<compile_context>
chip_gen: v5e
topology: v5e:2x2
jax: 0.10.0
libtpu: 0.0.40
codegen_flags: <defaults>
</compile_context>

<pallas_src>
import math
from functools import partial

import jax
import jax.numpy as jnp
from jax import lax
from jax.experimental import pallas as pl
from jax.experimental.pallas import tpu as pltpu


# ----------------------------- Pallas kernel ---------------------------------
def transformer_kernel(xq_ref, xkv_ref, wqkv_ref, wout_ref, w1_ref, w2_ref, vec_ref,
                       out_ref, m_ref, l_ref, acc_ref,
                       *, D, Dff, H, dh, TQ, TK, NKV):
    f32 = jnp.float32
    bf16 = jnp.bfloat16
    qi = pl.program_id(1)
    kv = pl.program_id(2)

    # ---- init running softmax state at the first KV step of this query tile ----
    @pl.when(kv == 0)
    def _():
        m_ref[...] = jnp.full_like(m_ref, -1e30)
        l_ref[...] = jnp.zeros_like(l_ref)
        acc_ref[...] = jnp.zeros_like(acc_ref)

    # ---- online-softmax attention update (skip fully-masked KV tiles) ----
    @pl.when(kv <= qi)
    def _():
        xq = xq_ref[0]                                                    # (TQ, D) f32
        xk = xkv_ref[0]                                                   # (TK, D) f32

        # single lane-dense QKV projections (Q pre-scaled by 1/sqrt(dh) host-side)
        q = jnp.dot(xq, wqkv_ref[:D, :D], preferred_element_type=f32) + wqkv_ref[D:, :D]
        kvp = jnp.dot(xk, wqkv_ref[:D, D:], preferred_element_type=f32) + wqkv_ref[D:, D:]
        k = kvp[:, :D]
        v = kvp[:, D:]

        # head split -> (H, T, dh); bf16 operands for the O(L^2) MXU work
        qh = jnp.transpose(q.astype(bf16).reshape(TQ, H, dh), (1, 0, 2))  # (H, TQ, dh)
        kh = jnp.transpose(k.astype(bf16).reshape(TK, H, dh), (1, 0, 2))  # (H, TK, dh)
        vh = jnp.transpose(v.astype(bf16).reshape(TK, H, dh), (1, 0, 2))  # (H, TK, dh)

        s = jnp.einsum('hqd,hkd->hqk', qh, kh,
                       preferred_element_type=f32)                       # (H, TQ, TK) f32

        # causal mask (only non-trivial on the diagonal tile); no div/mod needed
        rows = qi * TQ + lax.broadcasted_iota(jnp.int32, (TQ, TK), 0)
        cols = kv * TK + lax.broadcasted_iota(jnp.int32, (TQ, TK), 1)
        s = jnp.where((cols <= rows)[None, :, :], s, -1e30)

        m_prev = m_ref[...]                                               # (H, TQ, 1)
        m_new = jnp.maximum(m_prev, jnp.max(s, axis=-1, keepdims=True))
        alpha = jnp.exp(m_prev - m_new)
        p = jnp.exp(s - m_new)                                            # (H, TQ, TK) f32
        l_ref[...] = alpha * l_ref[...] + jnp.sum(p, axis=-1, keepdims=True)
        acc_ref[...] = alpha * acc_ref[...] + jnp.einsum(
            'hqk,hkd->hqd', p.astype(bf16), vh, preferred_element_type=f32)
        m_ref[...] = m_new

    # ---- finalize: out-proj, residual, LN1, FFN, LN2, decoder for this query tile ----
    @pl.when(kv == NKV - 1)
    def _():
        # vec slab rows: 0 ln1_w | 1 ln1_b | 2 ln2_w | 3 ln2_b | 4 wd | 5 bd | 6,7 pad
        o = acc_ref[...] * pl.reciprocal(l_ref[...], approx=True)         # (H, TQ, dh)
        o2 = jnp.transpose(o, (1, 0, 2)).reshape(TQ, H * dh)              # (TQ, D), head-major
        # fused per-head output projection + head-sum: one matmul with the packed W_o^T
        attn = jnp.dot(o2, wout_ref[:D, :], preferred_element_type=f32) + wout_ref[D:, :]

        xq = xq_ref[0]
        y = xq + attn
        mu = jnp.mean(y, axis=-1, keepdims=True)
        var = jnp.mean((y - mu) ** 2, axis=-1, keepdims=True)
        y = (y - mu) * lax.rsqrt(var + 1e-5) * vec_ref[0:1, :] + vec_ref[1:2, :]

        h1 = jnp.maximum(
            jnp.dot(y, w1_ref[:D, :], preferred_element_type=f32) + w1_ref[D:, :], 0.0)
        ff = jnp.dot(h1, w2_ref[:Dff, :], preferred_element_type=f32) + w2_ref[Dff:, :]

        z = y + ff
        mu = jnp.mean(z, axis=-1, keepdims=True)
        var = jnp.mean((z - mu) ** 2, axis=-1, keepdims=True)
        z = (z - mu) * lax.rsqrt(var + 1e-5) * vec_ref[2:3, :] + vec_ref[3:4, :]

        # decoder Linear(D, 1): row-wise reduce against wd, plus bd
        dec = jnp.sum(z * vec_ref[4:5, :], axis=-1, keepdims=True) + vec_ref[5:6, 0:1]
        out_ref[0] = dec                                                   # (TQ, 1)


# ----------------------------- glue (plain JAX) -------------------------------
def positional_encoding(max_len, d_model):
    pos = jnp.arange(max_len, dtype=jnp.float32)[:, None]
    div = jnp.exp(jnp.arange(0, d_model, 2, dtype=jnp.float32)
                  * (-math.log(10000.0) / d_model))
    pe = jnp.zeros((max_len, d_model), jnp.float32)
    pe = pe.at[:, 0::2].set(jnp.sin(pos * div))
    pe = pe.at[:, 1::2].set(jnp.cos(pos * div))
    return pe


def init_params(key, D, Dff):
    ks = jax.random.split(key, 9)
    u = lambda k, shape, s=0.1: jax.random.uniform(k, shape, jnp.float32, -s, s)
    # PyTorch convention: linear weight shape is (out_features, in_features)
    return dict(
        w_in=u(ks[0], (3 * D, D)), b_in=u(ks[1], (1, 3 * D)),
        w_out=u(ks[2], (D, D)), b_out=u(ks[3], (1, D)),
        ln1_w=jnp.ones((1, D), jnp.float32), ln1_b=jnp.zeros((1, D), jnp.float32),
        w1=u(ks[4], (Dff, D)), b1=u(ks[5], (1, Dff)),
        w2=u(ks[6], (D, Dff)), b2=u(ks[7], (1, D)),
        ln2_w=jnp.ones((1, D), jnp.float32), ln2_b=jnp.zeros((1, D), jnp.float32),
        wd=u(ks[8], (1, D)), bd=jnp.zeros((1, 1), jnp.float32),
    )


def prepare_params(params, *, nhead):
    """One-time host-side packing into a few lane-dense slabs."""
    D = params["w_out"].shape[0]
    Dff = params["w1"].shape[0]
    dh = D // nhead
    scale = 1.0 / math.sqrt(dh)

    # QKV: x @ W_in^T + b_in, packed (D+1, 3D); fold 1/sqrt(dh) into the Q columns + bias.
    col_scale = jnp.concatenate([jnp.full((D,), scale, jnp.float32),
                                 jnp.ones((2 * D,), jnp.float32)])[None, :]
    wqkv = jnp.concatenate([params["w_in"].T * col_scale,
                            params["b_in"] * col_scale], axis=0)          # (D+1, 3D)

    # Attention output projection: concat(heads) @ W_o^T + b_o, packed (D+1, D)
    wout = jnp.concatenate([params["w_out"].T, params["b_out"]], axis=0)

    # FFN slabs: (D+1, Dff) = [W1^T ; b1], (Dff+1, D) = [W2^T ; b2]
    w1s = jnp.concatenate([params["w1"].T, params["b1"]], axis=0)
    w2s = jnp.concatenate([params["w2"].T, params["b2"]], axis=0)

    # LN / decoder vectors: (8, D)
    vec = jnp.concatenate([params["ln1_w"], params["ln1_b"],
                           params["ln2_w"], params["ln2_b"],
                           params["wd"],
                           jnp.broadcast_to(params["bd"], (1, D)),
                           jnp.zeros((2, D), jnp.float32)], axis=0)

    return dict(wqkv=wqkv, wout=wout, w1s=w1s, w2s=w2s, vec=vec,
                D=D, Dff=Dff, nhead=nhead)


def _choose_tile(L):
    """Largest power-of-two tile that divides L and leaves >=2 tiles; else full L.

    For production sequence lengths (L = 24*input_window + output_window) pick the
    largest tile fitting the per-generation VMEM budget (v7x has 64 MiB physical).
    """
    for t in (256, 128, 64, 32, 16, 8):
        if L % t == 0 and t < L:
            return t
    return L


def transformer_forward(day_of_week, src, prep, *, output_window):
    del day_of_week  # unused by the PyTorch forward as well
    B, S = src.shape
    L = S + output_window
    D, Dff, H = prep["D"], prep["Dff"], prep["nhead"]
    dh = D // H

    # src = cat((src, zeros(B, output_window)), dim=1); x = src[..., None] + PE
    src_pad = jnp.concatenate([src, jnp.zeros((B, output_window), src.dtype)], axis=1)
    pe = positional_encoding(L, D)
    x = src_pad[:, :, None].astype(jnp.float32) + pe[None]               # (B, L, D)

    TQ = TK = _choose_tile(L)
    NQ, NKV = L // TQ, L // TK

    flops = int(B * (4 * L * 3 * D * D + 4 * H * L * L * dh
                     + 2 * L * D * D + 4 * L * D * Dff + 2 * L * D))
    transcendentals = int(B * H * L * L + 4 * B * L)
    bytes_accessed = int(4 * (B * L * D * (1 + NQ) + (D + 1) * 3 * D + (D + 1) * D
                              + (D + 1) * Dff + (Dff + 1) * D + 8 * D + B * L))

    kernel = partial(transformer_kernel, D=D, Dff=Dff, H=H, dh=dh, TQ=TQ, TK=TK, NKV=NKV)

    out = pl.pallas_call(
        kernel,
        out_shape=jax.ShapeDtypeStruct((B, L, 1), jnp.float32),
        grid_spec=pltpu.PrefetchScalarGridSpec(
            num_scalar_prefetch=0,
            grid=(B, NQ, NKV),
            in_specs=[
                # x for the query tile (also used for the residual in the finalize phase)
                pl.BlockSpec((1, TQ, D), lambda b, q, k: (b, q, 0)),
                # x for the KV tile; clamp to the causal diagonal so masked tiles are not DMA'd
                pl.BlockSpec((1, TK, D), lambda b, q, k: (b, jnp.minimum(k, q), 0)),
                pl.BlockSpec((D + 1, 3 * D), lambda b, q, k: (0, 0)),     # QKV slab
                pl.BlockSpec((D + 1, D), lambda b, q, k: (0, 0)),         # out-proj slab
                pl.BlockSpec((D + 1, Dff), lambda b, q, k: (0, 0)),       # FFN W1 slab
                pl.BlockSpec((Dff + 1, D), lambda b, q, k: (0, 0)),       # FFN W2 slab
                pl.BlockSpec((8, D), lambda b, q, k: (0, 0)),             # LN / decoder vectors
            ],
            out_specs=pl.BlockSpec((1, TQ, 1), lambda b, q, k: (b, q, 0)),
            scratch_shapes=[
                pltpu.VMEM((H, TQ, 1), jnp.float32),    # running max m
                pltpu.VMEM((H, TQ, 1), jnp.float32),    # running sum l
                pltpu.VMEM((H, TQ, dh), jnp.float32),   # attention accumulator
            ],
        ),
        compiler_params=pltpu.CompilerParams(
            dimension_semantics=("parallel", "parallel", "arbitrary"),
            vmem_limit_bytes=32 * 1024 * 1024,
        ),
        cost_estimate=pl.CostEstimate(flops=flops, transcendentals=transcendentals,
                                      bytes_accessed=bytes_accessed),
    )(x, x, prep["wqkv"], prep["wout"], prep["w1s"], prep["w2s"], prep["vec"])

    out = out[:, :, 0]                                                    # (B, L)
    return out[:, -output_window:]                                        # (B, output_window)


# ----------------------------- pure-JAX reference -----------------------------
def _layernorm(x, w, b, eps=1e-5):
    mu = jnp.mean(x, axis=-1, keepdims=True)
    var = jnp.mean((x - mu) ** 2, axis=-1, keepdims=True)
    return (x - mu) / jnp.sqrt(var + eps) * w + b


def reference_forward(day_of_week, src, params, *, output_window, nhead):
    del day_of_week
    B, S = src.shape
    L = S + output_window
    D = params["w_out"].shape[0]
    dh = D // nhead
    src_pad = jnp.concatenate([src, jnp.zeros((B, output_window), src.dtype)], axis=1)
    pe = positional_encoding(L, D)
    x = src_pad.T[:, :, None] + pe[:, None, :]                            # (L, B, D)
    cmask = jnp.where(jnp.arange(L)[None, :] <= jnp.arange(L)[:, None], 0.0, -1e9)

    def per_batch(xb):                                                    # (L, D)
        qkv = xb @ params["w_in"].T + params["b_in"][0]
        q, k, v = qkv[:, :D], qkv[:, D:2 * D], qkv[:, 2 * D:]
        outs = []
        for h in range(nhead):
            qh, kh, vh = (q[:, h * dh:(h + 1) * dh], k[:, h * dh:(h + 1) * dh],
                          v[:, h * dh:(h + 1) * dh])
            s = qh @ kh.T / math.sqrt(dh) + cmask
            outs.append(jax.nn.softmax(s, axis=-1) @ vh)
        a = jnp.concatenate(outs, -1) @ params["w_out"].T + params["b_out"][0]
        y = _layernorm(xb + a, params["ln1_w"][0], params["ln1_b"][0])
        ff = jnp.maximum(y @ params["w1"].T + params["b1"][0], 0.0) \
             @ params["w2"].T + params["b2"][0]
        y = _layernorm(y + ff, params["ln2_w"][0], params["ln2_b"][0])
        return y @ params["wd"].T + params["bd"][0]                       # (L, 1)

    ys = jax.vmap(per_batch, in_axes=1, out_axes=1)(x)                    # (L, B, 1)
    out = ys[:, :, 0].T                                                   # (B, L)
    return out[:, -output_window:]


# ----------------------------------- main -------------------------------------
if __name__ == "__main__":
    output_window = 4
    nhead = output_window                     # as in the PyTorch module
    D = output_window * 4                     # feature_size = 16
    Dff = D * 4                               # dim_feedforward = 64
    B = 2                                     # batch
    S = 12                                    # input length (stand-in for 24*input_window); L = 16

    key = jax.random.PRNGKey(0)
    kp, kx = jax.random.split(key)
    params = init_params(kp, D, Dff)
    prep = prepare_params(params, nhead=nhead)
    src = jax.random.normal(kx, (B, S), jnp.float32)
    day_of_week = jnp.zeros((B,), jnp.int32)  # unused, matches PyTorch signature

    out = transformer_forward(day_of_week, src, prep, output_window=output_window)
    out = jax.block_until_ready(out)

    ref = reference_forward(day_of_week, src, params,
                            output_window=output_window, nhead=nhead)
    assert out.shape == (B, output_window)
    assert jnp.allclose(out, ref, atol=5e-2, rtol=5e-2), (out, ref)
    print("KERNEL_OK")
</pallas_src>

<mosaic_0001>
module attributes {stable_mosaic.version = 11 : i64} {
  func.func @transformer_kernel(%arg0: i32, %arg1: i32, %arg2: i32, %arg3: memref<1x8x16xf32, #tpu.memory_space<vmem>>, %arg4: memref<1x8x16xf32, #tpu.memory_space<vmem>>, %arg5: memref<17x48xf32, #tpu.memory_space<vmem>>, %arg6: memref<17x16xf32, #tpu.memory_space<vmem>>, %arg7: memref<17x64xf32, #tpu.memory_space<vmem>>, %arg8: memref<65x16xf32, #tpu.memory_space<vmem>>, %arg9: memref<8x16xf32, #tpu.memory_space<vmem>>, %arg10: memref<1x8x1xf32, #tpu.memory_space<vmem>>, %arg11: memref<4x8x1xf32, #tpu.memory_space<vmem>>, %arg12: memref<4x8x1xf32, #tpu.memory_space<vmem>>, %arg13: memref<4x8x4xf32, #tpu.memory_space<vmem>>) attributes {dimension_semantics = [#tpu.dimension_semantics<parallel>, #tpu.dimension_semantics<parallel>, #tpu.dimension_semantics<arbitrary>], iteration_bounds = array<i64: 2, 2, 2>, scalar_prefetch = 0 : i64, scratch_operands = 3 : i64, tpu.core_type = #tpu.core_type<tc>, window_params = [{transform_indices = @transform_0, window_bounds = array<i64: 1, 8, 16>}, {transform_indices = @transform_1, window_bounds = array<i64: 1, 8, 16>}, {pipeline_mode = #tpu.pipeline_mode<synchronous>, transform_indices = @transform_2, window_bounds = array<i64: 17, 48>}, {pipeline_mode = #tpu.pipeline_mode<synchronous>, transform_indices = @transform_3, window_bounds = array<i64: 17, 16>}, {pipeline_mode = #tpu.pipeline_mode<synchronous>, transform_indices = @transform_4, window_bounds = array<i64: 17, 64>}, {pipeline_mode = #tpu.pipeline_mode<synchronous>, transform_indices = @transform_5, window_bounds = array<i64: 65, 16>}, {pipeline_mode = #tpu.pipeline_mode<synchronous>, transform_indices = @transform_6, window_bounds = array<i64: 8, 16>}, {transform_indices = @transform_7, window_bounds = array<i64: 1, 8, 1>}]} {
    %c0_i32 = arith.constant 0 : i32
    %0 = arith.cmpi eq, %arg2, %c0_i32 : i32
    %1 = arith.extui %0 : i1 to i32
    %c0_i32_0 = arith.constant 0 : i32
    %2 = arith.cmpi ne, %1, %c0_i32_0 : i32
    scf.if %2 {
      %cst = arith.constant -1.000000e+30 : f32
      %9 = vector.broadcast %cst : f32 to vector<4x8x1xf32>
      %c0 = arith.constant 0 : index
      %c0_3 = arith.constant 0 : index
      %c0_4 = arith.constant 0 : index
      %10 = vector.load %arg11[%c0, %c0_3, %c0_4] : memref<4x8x1xf32, #tpu.memory_space<vmem>>, vector<4x8x1xf32>
      tpu.vector_store %arg11[%c0, %c0_3, %c0_4], %9 {strides = array<i32>} : memref<4x8x1xf32, #tpu.memory_space<vmem>>, vector<4x8x1xf32>,
      %cst_5 = arith.constant 0.000000e+00 : f32
      %11 = vector.broadcast %cst_5 : f32 to vector<4x8x1xf32>
      %c0_6 = arith.constant 0 : index
      %c0_7 = arith.constant 0 : index
      %c0_8 = arith.constant 0 : index
      %12 = vector.load %arg12[%c0_6, %c0_7, %c0_8] : memref<4x8x1xf32, #tpu.memory_space<vmem>>, vector<4x8x1xf32>
      tpu.vector_store %arg12[%c0_6, %c0_7, %c0_8], %11 {strides = array<i32>} : memref<4x8x1xf32, #tpu.memory_space<vmem>>, vector<4x8x1xf32>,
      %cst_9 = arith.constant 0.000000e+00 : f32
      %13 = vector.broadcast %cst_9 : f32 to vector<4x8x4xf32>
      %c0_10 = arith.constant 0 : index
      %c0_11 = arith.constant 0 : index
      %c0_12 = arith.constant 0 : index
      %14 = vector.load %arg13[%c0_10, %c0_11, %c0_12] : memref<4x8x4xf32, #tpu.memory_space<vmem>>, vector<4x8x4xf32>
      tpu.vector_store %arg13[%c0_10, %c0_11, %c0_12], %13 {strides = array<i32>} : memref<4x8x4xf32, #tpu.memory_space<vmem>>, vector<4x8x4xf32>,
    } else {
    }
    %3 = arith.cmpi sle, %arg2, %arg1 : i32
    %4 = arith.extui %3 : i1 to i32
    %c0_i32_1 = arith.constant 0 : i32
    %5 = arith.cmpi ne, %4, %c0_i32_1 : i32
    scf.if %5 {
      %c0 = arith.constant 0 : index
      %c0_3 = arith.constant 0 : index
      %c0_4 = arith.constant 0 : index
      %9 = vector.load %arg3[%c0, %c0_3, %c0_4] : memref<1x8x16xf32, #tpu.memory_space<vmem>>, vector<1x8x16xf32>
      %10 = vector.shape_cast %9 : vector<1x8x16xf32> to vector<8x16xf32>
      %c0_5 = arith.constant 0 : index
      %c0_6 = arith.constant 0 : index
      %c0_7 = arith.constant 0 : index
      %11 = vector.load %arg4[%c0_5, %c0_6, %c0_7] : memref<1x8x16xf32, #tpu.memory_space<vmem>>, vector<1x8x16xf32>
      %12 = vector.shape_cast %11 : vector<1x8x16xf32> to vector<8x16xf32>
      %c0_8 = arith.constant 0 : index
      %c0_9 = arith.constant 0 : index
      %13 = vector.load %arg5[%c0_8, %c0_9] : memref<17x48xf32, #tpu.memory_space<vmem>>, vector<16x16xf32>
      %cst = arith.constant dense<0.000000e+00> : vector<8x16xf32>
      %14 = tpu.matmul %10, %13, %cst {dimension_numbers = #tpu.dot_dimension_numbers<[1], [0], [0], [1], [0, 0, 1, 1], [], []>} : vector<8x16xf32>, vector<16x16xf32>, vector<8x16xf32> -> vector<8x16xf32>
      %c16 = arith.constant 16 : index
      %c0_10 = arith.constant 0 : index
      %15 = vector.load %arg5[%c16, %c0_10] : memref<17x48xf32, #tpu.memory_space<vmem>>, vector<1x16xf32>
      %16 = vector.broadcast %15 : vector<1x16xf32> to vector<8x16xf32>
      %17 = arith.addf %14, %16 : vector<8x16xf32>
      %c0_11 = arith.constant 0 : index
      %c16_12 = arith.constant 16 : index
      %18 = vector.load %arg5[%c0_11, %c16_12] : memref<17x48xf32, #tpu.memory_space<vmem>>, vector<16x32xf32>
      %cst_13 = arith.constant dense<0.000000e+00> : vector<8x32xf32>
      %19 = tpu.matmul %12, %18, %cst_13 {dimension_numbers = #tpu.dot_dimension_numbers<[1], [0], [0], [1], [0, 0, 1, 1], [], []>} : vector<8x16xf32>, vector<16x32xf32>, vector<8x32xf32> -> vector<8x32xf32>
      %c16_14 = arith.constant 16 : index
      %c16_15 = arith.constant 16 : index
      %20 = vector.load %arg5[%c16_14, %c16_15] : memref<17x48xf32, #tpu.memory_space<vmem>>, vector<1x32xf32>
      %21 = vector.broadcast %20 : vector<1x32xf32> to vector<8x32xf32>
      %22 = arith.addf %19, %21 : vector<8x32xf32>
      %23 = vector.extract_strided_slice %22 {offsets = [0, 0], sizes = [8, 16], strides = [1, 1]} : vector<8x32xf32> to vector<8x16xf32>
      %24 = vector.extract_strided_slice %22 {offsets = [0, 16], sizes = [8, 16], strides = [1, 1]} : vector<8x32xf32> to vector<8x16xf32>
      %25 = arith.truncf %17 : vector<8x16xf32> to vector<8x16xbf16>
      %26 = vector.shape_cast %25 : vector<8x16xbf16> to vector<8x4x4xbf16>
      %27 = tpu.transpose %26, [1, 0, 2] : vector<8x4x4xbf16> -> vector<4x8x4xbf16>
      %28 = arith.truncf %23 : vector<8x16xf32> to vector<8x16xbf16>
      %29 = vector.shape_cast %28 : vector<8x16xbf16> to vector<8x4x4xbf16>
      %30 = tpu.transpose %29, [1, 0, 2] : vector<8x4x4xbf16> -> vector<4x8x4xbf16>
      %31 = arith.truncf %24 : vector<8x16xf32> to vector<8x16xbf16>
      %32 = vector.shape_cast %31 : vector<8x16xbf16> to vector<8x4x4xbf16>
      %33 = tpu.transpose %32, [1, 0, 2] : vector<8x4x4xbf16> -> vector<4x8x4xbf16>
      "tpu.trace_start"() <{level = 10 : i32, message = "hqd,hkd->hqk"}> : () -> ()
      %cst_16 = arith.constant dense<0.000000e+00> : vector<4x8x8xf32>
      %34 = tpu.matmul %27, %30, %cst_16 {dimension_numbers = #tpu.dot_dimension_numbers<[2], [2], [1], [1], [0, 0, 0, 1, 1, 1], [0], [0]>} : vector<4x8x4xbf16>, vector<4x8x4xbf16>, vector<4x8x8xf32> -> vector<4x8x8xf32>
      "tpu.trace_stop"() : () -> ()
      %c8_i32 = arith.constant 8 : i32
      %35 = arith.muli %arg1, %c8_i32 : i32
      %36 = tpu.iota {dimensions = array<i32: 0>} : vector<8x8xi32>
      %37 = vector.broadcast %35 : i32 to vector<8x8xi32>
      %38 = arith.addi %37, %36 : vector<8x8xi32>
      %c8_i32_17 = arith.constant 8 : i32
      %39 = arith.muli %arg2, %c8_i32_17 : i32
      %40 = tpu.iota {dimensions = array<i32: 1>} : vector<8x8xi32>
      %41 = vector.broadcast %39 : i32 to vector<8x8xi32>
      %42 = arith.addi %41, %40 : vector<8x8xi32>
      %43 = arith.cmpi sle, %42, %38 : vector<8x8xi32>
      %44 = vector.shape_cast %43 : vector<8x8xi1> to vector<1x8x8xi1>
      %cst_18 = arith.constant -1.000000e+30 : f32
      %45 = vector.shape_cast %44 : vector<1x8x8xi1> to vector<1x8x8xi1>
      %46 = vector.broadcast %45 : vector<1x8x8xi1> to vector<4x8x8xi1>
      %47 = vector.broadcast %cst_18 : f32 to vector<4x8x8xf32>
      %48 = arith.select %46, %34, %47 : vector<4x8x8xi1>, vector<4x8x8xf32>
      %c0_19 = arith.constant 0 : index
      %c0_20 = arith.constant 0 : index
      %c0_21 = arith.constant 0 : index
      %49 = vector.load %arg11[%c0_19, %c0_20, %c0_21] : memref<4x8x1xf32, #tpu.memory_space<vmem>>, vector<4x8x1xf32>
      %cst_22 = arith.constant dense<0xFF800000> : vector<4x8xf32>
      %50 = vector.multi_reduction <maximumf>, %48, %cst_22 [2] : vector<4x8x8xf32> to vector<4x8xf32>
      %51 = vector.shape_cast %50 : vector<4x8xf32> to vector<4x8x1xf32>
      %52 = arith.maximumf %49, %51 : vector<4x8x1xf32>
      %53 = arith.subf %49, %52 : vector<4x8x1xf32>
      %54 = math.exp %53 : vector<4x8x1xf32>
      %55 = vector.broadcast %52 : vector<4x8x1xf32> to vector<4x8x8xf32>
      %56 = arith.subf %48, %55 : vector<4x8x8xf32>
      %57 = math.exp %56 : vector<4x8x8xf32>
      %c0_23 = arith.constant 0 : index
      %c0_24 = arith.constant 0 : index
      %c0_25 = arith.constant 0 : index
      %58 = vector.load %arg12[%c0_23, %c0_24, %c0_25] : memref<4x8x1xf32, #tpu.memory_space<vmem>>, vector<4x8x1xf32>
      %59 = arith.mulf %54, %58 : vector<4x8x1xf32>
      %cst_26 = arith.constant dense<0.000000e+00> : vector<4x8xf32>
      %60 = vector.multi_reduction <add>, %57, %cst_26 [2] : vector<4x8x8xf32> to vector<4x8xf32>
      %61 = vector.shape_cast %60 : vector<4x8xf32> to vector<4x8x1xf32>
      %62 = arith.addf %59, %61 : vector<4x8x1xf32>
      %c0_27 = arith.constant 0 : index
      %c0_28 = arith.constant 0 : index
      %c0_29 = arith.constant 0 : index
      %63 = vector.load %arg12[%c0_27, %c0_28, %c0_29] : memref<4x8x1xf32, #tpu.memory_space<vmem>>, vector<4x8x1xf32>
      tpu.vector_store %arg12[%c0_27, %c0_28, %c0_29], %62 {strides = array<i32>} : memref<4x8x1xf32, #tpu.memory_space<vmem>>, vector<4x8x1xf32>,
      %c0_30 = arith.constant 0 : index
      %c0_31 = arith.constant 0 : index
      %c0_32 = arith.constant 0 : index
      %64 = vector.load %arg13[%c0_30, %c0_31, %c0_32] : memref<4x8x4xf32, #tpu.memory_space<vmem>>, vector<4x8x4xf32>
      %65 = vector.broadcast %54 : vector<4x8x1xf32> to vector<4x8x4xf32>
      %66 = arith.mulf %65, %64 : vector<4x8x4xf32>
      %67 = arith.truncf %57 : vector<4x8x8xf32> to vector<4x8x8xbf16>
      "tpu.trace_start"() <{level = 10 : i32, message = "hqk,hkd->hqd"}> : () -> ()
      %cst_33 = arith.constant dense<0.000000e+00> : vector<4x8x4xf32>
      %68 = tpu.matmul %67, %33, %cst_33 {dimension_numbers = #tpu.dot_dimension_numbers<[2], [1], [1], [2], [0, 0, 0, 1, 1, 2], [0], [0]>} : vector<4x8x8xbf16>, vector<4x8x4xbf16>, vector<4x8x4xf32> -> vector<4x8x4xf32>
      "tpu.trace_stop"() : () -> ()
      %69 = arith.addf %66, %68 : vector<4x8x4xf32>
      %c0_34 = arith.constant 0 : index
      %c0_35 = arith.constant 0 : index
      %c0_36 = arith.constant 0 : index
      %70 = vector.load %arg13[%c0_34, %c0_35, %c0_36] : memref<4x8x4xf32, #tpu.memory_space<vmem>>, vector<4x8x4xf32>
      tpu.vector_store %arg13[%c0_34, %c0_35, %c0_36], %69 {strides = array<i32>} : memref<4x8x4xf32, #tpu.memory_space<vmem>>, vector<4x8x4xf32>,
      %c0_37 = arith.constant 0 : index
      %c0_38 = arith.constant 0 : index
      %c0_39 = arith.constant 0 : index
      %71 = vector.load %arg11[%c0_37, %c0_38, %c0_39] : memref<4x8x1xf32, #tpu.memory_space<vmem>>, vector<4x8x1xf32>
      tpu.vector_store %arg11[%c0_37, %c0_38, %c0_39], %52 {strides = array<i32>} : memref<4x8x1xf32, #tpu.memory_space<vmem>>, vector<4x8x1xf32>,
    } else {
    }
    %c1_i32 = arith.constant 1 : i32
    %6 = arith.cmpi eq, %arg2, %c1_i32 : i32
    %7 = arith.extui %6 : i1 to i32
    %c0_i32_2 = arith.constant 0 : i32
    %8 = arith.cmpi ne, %7, %c0_i32_2 : i32
    scf.if %8 {
      %c0 = arith.constant 0 : index
      %c0_3 = arith.constant 0 : index
      %c0_4 = arith.constant 0 : index
      %9 = vector.load %arg13[%c0, %c0_3, %c0_4] : memref<4x8x4xf32, #tpu.memory_space<vmem>>, vector<4x8x4xf32>
      %c0_5 = arith.constant 0 : index
      %c0_6 = arith.constant 0 : index
      %c0_7 = arith.constant 0 : index
      %10 = vector.load %arg12[%c0_5, %c0_6, %c0_7] : memref<4x8x1xf32, #tpu.memory_space<vmem>>, vector<4x8x1xf32>
      %11 = tpu.reciprocal %10 {approx = true} : vector<4x8x1xf32> -> vector<4x8x1xf32>
      %12 = vector.broadcast %11 : vector<4x8x1xf32> to vector<4x8x4xf32>
      %13 = arith.mulf %9, %12 : vector<4x8x4xf32>
      %14 = tpu.transpose %13, [1, 0, 2] : vector<4x8x4xf32> -> vector<8x4x4xf32>
      %15 = vector.shape_cast %14 : vector<8x4x4xf32> to vector<8x16xf32>
      %c0_8 = arith.constant 0 : index
      %c0_9 = arith.constant 0 : index
      %16 = vector.load %arg6[%c0_8, %c0_9] : memref<17x16xf32, #tpu.memory_space<vmem>>, vector<16x16xf32>
      %cst = arith.constant dense<0.000000e+00> : vector<8x16xf32>
      %17 = tpu.matmul %15, %16, %cst {dimension_numbers = #tpu.dot_dimension_numbers<[1], [0], [0], [1], [0, 0, 1, 1], [], []>} : vector<8x16xf32>, vector<16x16xf32>, vector<8x16xf32> -> vector<8x16xf32>
      %c16 = arith.constant 16 : index
      %c0_10 = arith.constant 0 : index
      %18 = vector.load %arg6[%c16, %c0_10] : memref<17x16xf32, #tpu.memory_space<vmem>>, vector<1x16xf32>
      %19 = vector.broadcast %18 : vector<1x16xf32> to vector<8x16xf32>
      %20 = arith.addf %17, %19 : vector<8x16xf32>
      %c0_11 = arith.constant 0 : index
      %c0_12 = arith.constant 0 : index
      %c0_13 = arith.constant 0 : index
      %21 = vector.load %arg3[%c0_11, %c0_12, %c0_13] : memref<1x8x16xf32, #tpu.memory_space<vmem>>, vector<1x8x16xf32>
      %22 = vector.shape_cast %21 : vector<1x8x16xf32> to vector<8x16xf32>
      %23 = arith.addf %22, %20 : vector<8x16xf32>
      %cst_14 = arith.constant dense<0.000000e+00> : vector<8xf32>
      %24 = vector.multi_reduction <add>, %23, %cst_14 [1] : vector<8x16xf32> to vector<8xf32>
      %25 = vector.shape_cast %24 : vector<8xf32> to vector<8x1xf32>
      %cst_15 = arith.constant 1.600000e+01 : f32
      %26 = vector.broadcast %cst_15 : f32 to vector<8x1xf32>
      %27 = arith.divf %25, %26 : vector<8x1xf32>
      %28 = vector.broadcast %27 : vector<8x1xf32> to vector<8x16xf32>
      %29 = arith.subf %23, %28 : vector<8x16xf32>
      %30 = arith.mulf %29, %29 : vector<8x16xf32>
      %cst_16 = arith.constant dense<0.000000e+00> : vector<8xf32>
      %31 = vector.multi_reduction <add>, %30, %cst_16 [1] : vector<8x16xf32> to vector<8xf32>
      %32 = vector.shape_cast %31 : vector<8xf32> to vector<8x1xf32>
      %cst_17 = arith.constant 1.600000e+01 : f32
      %33 = vector.broadcast %cst_17 : f32 to vector<8x1xf32>
      %34 = arith.divf %32, %33 : vector<8x1xf32>
      %35 = vector.broadcast %27 : vector<8x1xf32> to vector<8x16xf32>
      %36 = arith.subf %23, %35 : vector<8x16xf32>
      %cst_18 = arith.constant 9.99999974E-6 : f32
      %37 = vector.broadcast %cst_18 : f32 to vector<8x1xf32>
      %38 = arith.addf %34, %37 : vector<8x1xf32>
      %39 = math.rsqrt %38 : vector<8x1xf32>
      %40 = vector.broadcast %39 : vector<8x1xf32> to vector<8x16xf32>
      %41 = arith.mulf %36, %40 : vector<8x16xf32>
      %c0_19 = arith.constant 0 : index
      %c0_20 = arith.constant 0 : index
      %42 = vector.load %arg9[%c0_19, %c0_20] : memref<8x16xf32, #tpu.memory_space<vmem>>, vector<1x16xf32>
      %43 = vector.broadcast %42 : vector<1x16xf32> to vector<8x16xf32>
      %44 = arith.mulf %41, %43 : vector<8x16xf32>
      %c1 = arith.constant 1 : index
      %c0_21 = arith.constant 0 : index
      %45 = vector.load %arg9[%c1, %c0_21] : memref<8x16xf32, #tpu.memory_space<vmem>>, vector<1x16xf32>
      %46 = vector.broadcast %45 : vector<1x16xf32> to vector<8x16xf32>
      %47 = arith.addf %44, %46 : vector<8x16xf32>
      %c0_22 = arith.constant 0 : index
      %c0_23 = arith.constant 0 : index
      %48 = vector.load %arg7[%c0_22, %c0_23] : memref<17x64xf32, #tpu.memory_space<vmem>>, vector<16x64xf32>
      %cst_24 = arith.constant dense<0.000000e+00> : vector<8x64xf32>
      %49 = tpu.matmul %47, %48, %cst_24 {dimension_numbers = #tpu.dot_dimension_numbers<[1], [0], [0], [1], [0, 0, 1, 1], [], []>} : vector<8x16xf32>, vector<16x64xf32>, vector<8x64xf32> -> vector<8x64xf32>
      %c16_25 = arith.constant 16 : index
      %c0_26 = arith.constant 0 : index
      %50 = vector.load %arg7[%c16_25, %c0_26] : memref<17x64xf32, #tpu.memory_space<vmem>>, vector<1x64xf32>
      %51 = vector.broadcast %50 : vector<1x64xf32> to vector<8x64xf32>
      %52 = arith.addf %49, %51 : vector<8x64xf32>
      %cst_27 = arith.constant 0.000000e+00 : f32
      %53 = vector.broadcast %cst_27 : f32 to vector<8x64xf32>
      %54 = arith.maximumf %52, %53 : vector<8x64xf32>
      %c0_28 = arith.constant 0 : index
      %c0_29 = arith.constant 0 : index
      %55 = vector.load %arg8[%c0_28, %c0_29] : memref<65x16xf32, #tpu.memory_space<vmem>>, vector<64x16xf32>
      %cst_30 = arith.constant dense<0.000000e+00> : vector<8x16xf32>
      %56 = tpu.matmul %54, %55, %cst_30 {dimension_numbers = #tpu.dot_dimension_numbers<[1], [0], [0], [1], [0, 0, 1, 1], [], []>} : vector<8x64xf32>, vector<64x16xf32>, vector<8x16xf32> -> vector<8x16xf32>
      %c64 = arith.constant 64 : index
      %c0_31 = arith.constant 0 : index
      %57 = vector.load %arg8[%c64, %c0_31] : memref<65x16xf32, #tpu.memory_space<vmem>>, vector<1x16xf32>
      %58 = vector.broadcast %57 : vector<1x16xf32> to vector<8x16xf32>
      %59 = arith.addf %56, %58 : vector<8x16xf32>
      %60 = arith.addf %47, %59 : vector<8x16xf32>
      %cst_32 = arith.constant dense<0.000000e+00> : vector<8xf32>
      %61 = vector.multi_reduction <add>, %60, %cst_32 [1] : vector<8x16xf32> to vector<8xf32>
      %62 = vector.shape_cast %61 : vector<8xf32> to vector<8x1xf32>
      %cst_33 = arith.constant 1.600000e+01 : f32
      %63 = vector.broadcast %cst_33 : f32 to vector<8x1xf32>
      %64 = arith.divf %62, %63 : vector<8x1xf32>
      %65 = vector.broadcast %64 : vector<8x1xf32> to vector<8x16xf32>
      %66 = arith.subf %60, %65 : vector<8x16xf32>
      %67 = arith.mulf %66, %66 : vector<8x16xf32>
      %cst_34 = arith.constant dense<0.000000e+00> : vector<8xf32>
      %68 = vector.multi_reduction <add>, %67, %cst_34 [1] : vector<8x16xf32> to vector<8xf32>
      %69 = vector.shape_cast %68 : vector<8xf32> to vector<8x1xf32>
      %cst_35 = arith.constant 1.600000e+01 : f32
      %70 = vector.broadcast %cst_35 : f32 to vector<8x1xf32>
      %71 = arith.divf %69, %70 : vector<8x1xf32>
      %72 = vector.broadcast %64 : vector<8x1xf32> to vector<8x16xf32>
      %73 = arith.subf %60, %72 : vector<8x16xf32>
      %cst_36 = arith.constant 9.99999974E-6 : f32
      %74 = vector.broadcast %cst_36 : f32 to vector<8x1xf32>
      %75 = arith.addf %71, %74 : vector<8x1xf32>
      %76 = math.rsqrt %75 : vector<8x1xf32>
      %77 = vector.broadcast %76 : vector<8x1xf32> to vector<8x16xf32>
      %78 = arith.mulf %73, %77 : vector<8x16xf32>
      %c2 = arith.constant 2 : index
      %c0_37 = arith.constant 0 : index
      %79 = vector.load %arg9[%c2, %c0_37] : memref<8x16xf32, #tpu.memory_space<vmem>>, vector<1x16xf32>
      %80 = vector.broadcast %79 : vector<1x16xf32> to vector<8x16xf32>
      %81 = arith.mulf %78, %80 : vector<8x16xf32>
      %c3 = arith.constant 3 : index
      %c0_38 = arith.constant 0 : index
      %82 = vector.load %arg9[%c3, %c0_38] : memref<8x16xf32, #tpu.memory_space<vmem>>, vector<1x16xf32>
      %83 = vector.broadcast %82 : vector<1x16xf32> to vector<8x16xf32>
      %84 = arith.addf %81, %83 : vector<8x16xf32>
      %c4 = arith.constant 4 : index
      %c0_39 = arith.constant 0 : index
      %85 = vector.load %arg9[%c4, %c0_39] : memref<8x16xf32, #tpu.memory_space<vmem>>, vector<1x16xf32>
      %86 = vector.broadcast %85 : vector<1x16xf32> to vector<8x16xf32>
      %87 = arith.mulf %84, %86 : vector<8x16xf32>
      %cst_40 = arith.constant dense<0.000000e+00> : vector<8xf32>
      %88 = vector.multi_reduction <add>, %87, %cst_40 [1] : vector<8x16xf32> to vector<8xf32>
      %89 = vector.shape_cast %88 : vector<8xf32> to vector<8x1xf32>
      %c5 = arith.constant 5 : index
      %c0_41 = arith.constant 0 : index
      %90 = vector.load %arg9[%c5, %c0_41] : memref<8x16xf32, #tpu.memory_space<vmem>>, vector<1x1xf32>
      %91 = vector.broadcast %90 : vector<1x1xf32> to vector<8x1xf32>
      %92 = arith.addf %89, %91 : vector<8x1xf32>
      %c0_42 = arith.constant 0 : index
      %c0_43 = arith.constant 0 : index
      %c0_44 = arith.constant 0 : index
      %93 = vector.load %arg10[%c0_42, %c0_43, %c0_44] : memref<1x8x1xf32, #tpu.memory_space<vmem>>, vector<1x8x1xf32>
      %94 = vector.shape_cast %93 : vector<1x8x1xf32> to vector<8x1xf32>
      %95 = vector.shape_cast %92 : vector<8x1xf32> to vector<1x8x1xf32>
      tpu.vector_store %arg10[%c0_42, %c0_43, %c0_44], %95 {strides = array<i32>} : memref<1x8x1xf32, #tpu.memory_space<vmem>>, vector<1x8x1xf32>,
    } else {
    }
    return
  }
  func.func @transform_0(%arg0: i32, %arg1: i32, %arg2: i32) -> (i32, i32, i32) {
    %c0_i32 = arith.constant 0 : i32
    %c0_i32_0 = arith.constant 0 : i32
    return %arg0, %arg1, %c0_i32 : i32, i32, i32
  }
  func.func @transform_1(%arg0: i32, %arg1: i32, %arg2: i32) -> (i32, i32, i32) {
    %0 = arith.minsi %arg2, %arg1 : i32
    %c0_i32 = arith.constant 0 : i32
    %c0_i32_0 = arith.constant 0 : i32
    return %arg0, %0, %c0_i32 : i32, i32, i32
  }
  func.func @transform_2(%arg0: i32, %arg1: i32, %arg2: i32) -> (i32, i32) {
    %c0_i32 = arith.constant 0 : i32
    %c0_i32_0 = arith.constant 0 : i32
    %c0_i32_1 = arith.constant 0 : i32
    return %c0_i32, %c0_i32_0 : i32, i32
  }
  func.func @transform_3(%arg0: i32, %arg1: i32, %arg2: i32) -> (i32, i32) {
    %c0_i32 = arith.constant 0 : i32
    %c0_i32_0 = arith.constant 0 : i32
    %c0_i32_1 = arith.constant 0 : i32
    return %c0_i32, %c0_i32_0 : i32, i32
  }
  func.func @transform_4(%arg0: i32, %arg1: i32, %arg2: i32) -> (i32, i32) {
    %c0_i32 = arith.constant 0 : i32
    %c0_i32_0 = arith.constant 0 : i32
    %c0_i32_1 = arith.constant 0 : i32
    return %c0_i32, %c0_i32_0 : i32, i32
  }
  func.func @transform_5(%arg0: i32, %arg1: i32, %arg2: i32) -> (i32, i32) {
    %c0_i32 = arith.constant 0 : i32
    %c0_i32_0 = arith.constant 0 : i32
    %c0_i32_1 = arith.constant 0 : i32
    return %c0_i32, %c0_i32_0 : i32, i32
  }
  func.func @transform_6(%arg0: i32, %arg1: i32, %arg2: i32) -> (i32, i32) {
    %c0_i32 = arith.constant 0 : i32
    %c0_i32_0 = arith.constant 0 : i32
    %c0_i32_1 = arith.constant 0 : i32
    return %c0_i32, %c0_i32_0 : i32, i32
  }
  func.func @transform_7(%arg0: i32, %arg1: i32, %arg2: i32) -> (i32, i32, i32) {
    %c0_i32 = arith.constant 0 : i32
    %c0_i32_0 = arith.constant 0 : i32
    return %arg0, %arg1, %c0_i32 : i32, i32, i32
  }
}

</mosaic_0001>

<llo_original>
// kernel: tpu_custom_call.1
$region0: #{tpu_custom_call.1}
  #allocation0 [shape = 'u32[]', space=smem, size = 0x4, offset = 0x4, fixed_abs, tag = 'smem constant byte address 0x4 - core index']
  #allocation1 [shape = 'u32[72,128]{1,0:T(1,128)}', space=vmem, size = 0x9000, scoped, tag = 'internal scratch']
  #allocation2 [shape = 'f32[4,8,1]{2,1,0:T(8,128)}', space=vmem, size = 0x4000, scoped, tag = 'scratch operand']
  #allocation3 [shape = 'f32[4,8,1]{2,1,0:T(8,128)}', space=vmem, size = 0x4000, scoped, tag = 'scratch operand']
  #allocation4 [shape = 'f32[4,8,4]{2,1,0:T(8,128)}', space=vmem, size = 0x4000, scoped, tag = 'scratch operand']
  %s0 = inlined_call_operand.vmem [shape: f32[2,16,16], index: 0, kind: input, shape index: {}]
  %s1 = inlined_call_operand.vmem [shape: f32[2,16,16], index: 1, kind: input, shape index: {}]
  %s2 = inlined_call_operand.vmem [shape: f32[17,48], index: 2, kind: input, shape index: {}]
  %s3 = inlined_call_operand.vmem [shape: f32[17,16], index: 3, kind: input, shape index: {}]
  %s4 = inlined_call_operand.vmem [shape: f32[17,64], index: 4, kind: input, shape index: {}]
  %s5 = inlined_call_operand.vmem [shape: f32[65,16], index: 5, kind: input, shape index: {}]
  %s6 = inlined_call_operand.hbm [shape: f32[8,16], index: 6, kind: input, shape index: {}]
  %s7 = inlined_call_operand.vmem [shape: f32[2,16,1], index: 7, kind: output, shape index: {}]
  %s8 = sld [smem:[#allocation0]]
  $region77: #{tpu_custom_call.1} parent=0
    _
  %s10 = ssub.s32 1, %s8
  %s11 = scalar_select 0, %s10, %s8
  $region1: #{tpu_custom_call.1} parent=0
    #allocation5 [shape = 'u8[4096]{0}', space=vmem, size = 0x1000, scoped, tag = 'input window, operand 6, single buffered']
    #allocation6 [shape = 's32[2]{0}', space=sflag, size = 0x8, scoped, tag = 'scoped memory for tpu_custom_call.1']
    %12 = vsyncpa [#allocation6], 0
    loop: start=0, step=1, limit=10
    $region2: #{tpu_custom_call.1} parent=1 // loop_pre_header
      _
    $region3: #{tpu_custom_call.1} parent=1 // loop_header
      %s14 = sphi 0, %s18
      %p15 = scmp.ge.s32.totalorder %s14, 10
      %s21 = sphi 0, %s40
      %s22 = sphi 0, %s36
      %s23 = sphi 0, %s32
      %s24 = sphi 0, %s21
      %s25 = sphi 0, %s22
      %s26 = sphi 0, %s23
      %s27 = sphi 0, %s24
      %s28 = sphi 0, %s25
      %s29 = sphi 0, %s26
      %s45 = sphi 0, %s47
      %s48 = sphi 0, %s45
      %s49 = sphi 0, %s48
      %s65 = sphi 0, %s49
      %s77 = sphi 0, %s79
      %s80 = sphi 0, %s77
      %s81 = sphi 0, %s80
      %s97 = sphi 0, %s81
      %s101 = sphi 0, %s101
      %s103 = sphi 0, %s101
      %s104 = sphi 0, %s103
      %s118 = sphi 0, %s104
      %s122 = sphi 0, %s122
      %s124 = sphi 0, %s122
      %s125 = sphi 0, %s124
      %s139 = sphi 0, %s125
      %s143 = sphi 0, %s143
      %s145 = sphi 0, %s143
      %s146 = sphi 0, %s145
      %s160 = sphi 0, %s146
      %s164 = sphi 0, %s164
      %s166 = sphi 0, %s164
      %s167 = sphi 0, %s166
      %s181 = sphi 0, %s167
      %s185 = sphi 0, %s185
      %s187 = sphi 0, %s185
      %s188 = sphi 0, %s187
      %s202 = sphi 0, %s188
      %s210 = sphi 0, %s212
      %s213 = sphi 0, %s210
      %s214 = sphi 0, %s213
      %s230 = sphi 0, %s214
    $region4: #{tpu_custom_call.1} parent=1 // loop_header_branch
      %17 = sbr.rel (%p15) target = $region8
    $region5: #{tpu_custom_call.1} parent=1 // loop_body
      %s19 = ssub.s32 %s14, 1
      %s20 = ssub.s32 %s14, 2
      %s30 = sadd.s32 1, %s23
      %p31 = scmp.ge.s32.totalorder %s30, 2
      %s32 = scalar_select %p31, 0, %s30
      %s33 = sadd.s32 1, %s22
      %s34 = scalar_select %p31, %s33, %s22
      %p35 = scmp.ge.s32.totalorder %s34, 2
      %s36 = scalar_select %p35, 0, %s34
      %s37 = sadd.s32 1, %s21
      %s38 = scalar_select %p35, %s37, %s21
      %p39 = scmp.ge.s32.totalorder %s38, 2
      %s40 = scalar_select %p39, 0, %s38
      %s41 = ssub.s32 %s21, %s40
      %s42 = ssub.s32 %s22, %s36
      %s43 = sor.u32 %s41, %s42
      %p44 = scmp.eq.s32.totalorder %s43, 0
      %s46 = sadd.s32 %s45, 1
      %s47 = scalar_select %p44, %s45, %s46
      %p50 = pneg %p44
      %p51 = scmp.eq.s32.totalorder %s14, 7
      %p52 = por %p50, %p51
      %p53 = scmp.ne.s32.totalorder %s45, %s48
      %p54 = scmp.eq.s32.totalorder %s14, 0
      %p55 = por %p53, %p54
      %p56 = scmp.ne.s32.totalorder %s45, %s48
      %p57 = scmp.eq.s32.totalorder %s19, 7
      %p58 = por %p56, %p57
      %p59 = scmp.ne.s32.totalorder %s48, %s49
      %p60 = scmp.eq.s32.totalorder %s19, 0
      %p61 = por %p59, %p60
      %p62 = scmp.ne.s32.totalorder %s48, %s49
      %p63 = scmp.eq.s32.totalorder %s20, 7
      %p64 = por %p62, %p63
      %p66 = scmp.ne.s32.totalorder %s49, %s65
      %p67 = scmp.eq.s32.totalorder %s20, 0
      %p68 = por %p66, %p67
      %p69 = scmp.lt.s32.totalorder %s23, %s22
      %s70 = scalar_select %p69, %s23, %s22
      %p71 = scmp.lt.s32.totalorder %s32, %s36
      %s72 = scalar_select %p71, %s32, %s36
      %s73 = ssub.s32 %s21, %s40
      %s74 = ssub.s32 %s70, %s72
      %s75 = sor.u32 %s73, %s74
      %p76 = scmp.eq.s32.totalorder %s75, 0
      %s78 = sadd.s32 %s77, 1
      %s79 = scalar_select %p76, %s77, %s78
      %p82 = pneg %p76
      %p83 = scmp.eq.s32.totalorder %s14, 7
      %p84 = por %p82, %p83
      %p85 = scmp.ne.s32.totalorder %s77, %s80
      %p86 = scmp.eq.s32.totalorder %s14, 0
      %p87 = por %p85, %p86
      %p88 = scmp.ne.s32.totalorder %s77, %s80
      %p89 = scmp.eq.s32.totalorder %s19, 7
      %p90 = por %p88, %p89
      %p91 = scmp.ne.s32.totalorder %s80, %s81
      %p92 = scmp.eq.s32.totalorder %s19, 0
      %p93 = por %p91, %p92
      %p94 = scmp.ne.s32.totalorder %s80, %s81
      %p95 = scmp.eq.s32.totalorder %s20, 7
      %p96 = por %p94, %p95
      %p98 = scmp.ne.s32.totalorder %s81, %s97
      %p99 = scmp.eq.s32.totalorder %s20, 0
      %p100 = por %p98, %p99
      %s102 = sadd.s32 %s101, 1
      %p105 = scmp.eq.s32.totalorder %s14, 7
      %p106 = scmp.ne.s32.totalorder %s101, %s103
      %p107 = scmp.eq.s32.totalorder %s14, 0
      %p108 = por %p106, %p107
      %p109 = scmp.ne.s32.totalorder %s101, %s103
      %p110 = scmp.eq.s32.totalorder %s19, 7
      %p111 = por %p109, %p110
      %p112 = scmp.ne.s32.totalorder %s103, %s104
      %p113 = scmp.eq.s32.totalorder %s19, 0
      %p114 = por %p112, %p113
      %p115 = scmp.ne.s32.totalorder %s103, %s104
      %p116 = scmp.eq.s32.totalorder %s20, 7
      %p117 = por %p115, %p116
      %p119 = scmp.ne.s32.totalorder %s104, %s118
      %p120 = scmp.eq.s32.totalorder %s20, 0
      %p121 = por %p119, %p120
      %s123 = sadd.s32 %s122, 1
      %p126 = scmp.eq.s32.totalorder %s14, 7
      %p127 = scmp.ne.s32.totalorder %s122, %s124
      %p128 = scmp.eq.s32.totalorder %s14, 0
      %p129 = por %p127, %p128
      %p130 = scmp.ne.s32.totalorder %s122, %s124
      %p131 = scmp.eq.s32.totalorder %s19, 7
      %p132 = por %p130, %p131
      %p133 = scmp.ne.s32.totalorder %s124, %s125
      %p134 = scmp.eq.s32.totalorder %s19, 0
      %p135 = por %p133, %p134
      %p136 = scmp.ne.s32.totalorder %s124, %s125
      %p137 = scmp.eq.s32.totalorder %s20, 7
      %p138 = por %p136, %p137
      %p140 = scmp.ne.s32.totalorder %s125, %s139
      %p141 = scmp.eq.s32.totalorder %s20, 0
      %p142 = por %p140, %p141
      %s144 = sadd.s32 %s143, 1
      %p147 = scmp.eq.s32.totalorder %s14, 7
      %p148 = scmp.ne.s32.totalorder %s143, %s145
      %p149 = scmp.eq.s32.totalorder %s14, 0
      %p150 = por %p148, %p149
      %p151 = scmp.ne.s32.totalorder %s143, %s145
      %p152 = scmp.eq.s32.totalorder %s19, 7
      %p153 = por %p151, %p152
      %p154 = scmp.ne.s32.totalorder %s145, %s146
      %p155 = scmp.eq.s32.totalorder %s19, 0
      %p156 = por %p154, %p155
      %p157 = scmp.ne.s32.totalorder %s145, %s146
      %p158 = scmp.eq.s32.totalorder %s20, 7
      %p159 = por %p157, %p158
      %p161 = scmp.ne.s32.totalorder %s146, %s160
      %p162 = scmp.eq.s32.totalorder %s20, 0
      %p163 = por %p161, %p162
      %s165 = sadd.s32 %s164, 1
      %p168 = scmp.eq.s32.totalorder %s14, 7
      %p169 = scmp.ne.s32.totalorder %s164, %s166
      %p170 = scmp.eq.s32.totalorder %s14, 0
      %p171 = por %p169, %p170
      %p172 = scmp.ne.s32.totalorder %s164, %s166
      %p173 = scmp.eq.s32.totalorder %s19, 7
      %p174 = por %p172, %p173
      %p175 = scmp.ne.s32.totalorder %s166, %s167
      %p176 = scmp.eq.s32.totalorder %s19, 0
      %p177 = por %p175, %p176
      %p178 = scmp.ne.s32.totalorder %s166, %s167
      %p179 = scmp.eq.s32.totalorder %s20, 7
      %p180 = por %p178, %p179
      %p182 = scmp.ne.s32.totalorder %s167, %s181
      %p183 = scmp.eq.s32.totalorder %s20, 0
      %p184 = por %p182, %p183
      %s186 = sadd.s32 %s185, 1
      %p189 = scmp.eq.s32.totalorder %s14, 7
      %p190 = scmp.ne.s32.totalorder %s185, %s187
      %p191 = scmp.eq.s32.totalorder %s14, 0
      %p192 = por %p190, %p191
      %p193 = scmp.ne.s32.totalorder %s185, %s187
      %p194 = scmp.eq.s32.totalorder %s19, 7
      %p195 = por %p193, %p194
      %p196 = scmp.ne.s32.totalorder %s187, %s188
      %p197 = scmp.eq.s32.totalorder %s19, 0
      %p198 = por %p196, %p197
      %p199 = scmp.ne.s32.totalorder %s187, %s188
      %p200 = scmp.eq.s32.totalorder %s20, 7
      %p201 = por %p199, %p200
      %p203 = scmp.ne.s32.totalorder %s188, %s202
      %p204 = scmp.eq.s32.totalorder %s20, 0
      %p205 = por %p203, %p204
      %s206 = ssub.s32 %s21, %s40
      %s207 = ssub.s32 %s22, %s36
      %s208 = sor.u32 %s206, %s207
      %p209 = scmp.eq.s32.totalorder %s208, 0
      %s211 = sadd.s32 %s210, 1
      %s212 = scalar_select %p209, %s210, %s211
      %p215 = pneg %p209
      %p216 = scmp.eq.s32.totalorder %s14, 7
      %p217 = por %p215, %p216
      %p218 = scmp.ne.s32.totalorder %s210, %s213
      %p219 = scmp.eq.s32.totalorder %s14, 0
      %p220 = por %p218, %p219
      %p221 = scmp.ne.s32.totalorder %s210, %s213
      %p222 = scmp.eq.s32.totalorder %s19, 7
      %p223 = por %p221, %p222
      %p224 = scmp.ne.s32.totalorder %s213, %s214
      %p225 = scmp.eq.s32.totalorder %s19, 0
      %p226 = por %p224, %p225
      %p227 = scmp.ne.s32.totalorder %s213, %s214
      %p228 = scmp.eq.s32.totalorder %s20, 7
      %p229 = por %p227, %p228
      %p231 = scmp.ne.s32.totalorder %s214, %s230
      %p232 = scmp.eq.s32.totalorder %s20, 0
      %p233 = por %p231, %p232
      %p234 = scmp.le.s32.totalorder 1, %s14
      %p235 = scmp.lt.s32.totalorder %s14, 9
      %p236 = pnand %p234, %p235
      %p237 = pneg %p236
      // Predicated region
      $region9: #{tpu_custom_call.1} parent=5 // pred_check
        _
      $region10: #{tpu_custom_call.1} parent=5 // pred_check_branch
        %239 = sbr.rel (%p236) target = $region12
      $region11: #{tpu_custom_call.1} parent=5 // pred_region
        %s240 = ssub.s32 %s14, 1
        // Predicated region
        $region13: #{tpu_custom_call.1} parent=11 // pred_check
          %p241 = pneg %p114
        $region14: #{tpu_custom_call.1} parent=11 // pred_check_branch
          %243 = sbr.rel (%p241) target = $region16
        $region15: #{tpu_custom_call.1} parent=11 // pred_region
          _
        $region16: #{tpu_custom_call.1} parent=11 // pred_fallthru
          _
        // Predicated region
        $region17: #{tpu_custom_call.1} parent=11 // pred_check
          %p244 = pneg %p135
        $region18: #{tpu_custom_call.1} parent=11 // pred_check_branch
          %246 = sbr.rel (%p244) target = $region20
        $region19: #{tpu_custom_call.1} parent=11 // pred_region
          _
        $region20: #{tpu_custom_call.1} parent=11 // pred_fallthru
          _
        // Predicated region
        $region21: #{tpu_custom_call.1} parent=11 // pred_check
          %p247 = pneg %p156
        $region22: #{tpu_custom_call.1} parent=11 // pred_check_branch
          %249 = sbr.rel (%p247) target = $region24
        $region23: #{tpu_custom_call.1} parent=11 // pred_region
          _
        $region24: #{tpu_custom_call.1} parent=11 // pred_fallthru
          _
        // Predicated region
        $region25: #{tpu_custom_call.1} parent=11 // pred_check
          %p250 = pneg %p177
        $region26: #{tpu_custom_call.1} parent=11 // pred_check_branch
          %252 = sbr.rel (%p250) target = $region28
        $region27: #{tpu_custom_call.1} parent=11 // pred_region
          _
        $region28: #{tpu_custom_call.1} parent=11 // pred_fallthru
          _
        // Predicated region
        $region29: #{tpu_custom_call.1} parent=11 // pred_check
          %p253 = pneg %p198
        $region30: #{tpu_custom_call.1} parent=11 // pred_check_branch
          %255 = sbr.rel (%p253) target = $region32
        $region31: #{tpu_custom_call.1} parent=11 // pred_region
          %257 = vsyncadd [#allocation6], 0
          %s259 = sshll.u32 %s6, 4
          %s260 = int_to_ptr.hbm [resolvable:$true] %s259
          %s261 = sshll.u32 [#allocation5], 4
          %s262 = int_to_ptr.vmem [resolvable:$true] %s261
          %264 = dma.hbm_to_vmem [thread:$0]  %s260, 128, %s262, [#allocation6]
        $region32: #{tpu_custom_call.1} parent=11 // pred_fallthru
          _
      $region12: #{tpu_custom_call.1} parent=5 // pred_fallthru
        _
      %p265 = scmp.lt.s32.totalorder %s14, 8
      // Predicated region
      $region33: #{tpu_custom_call.1} parent=5 // pred_check
        %p266 = pneg %p265
      $region34: #{tpu_custom_call.1} parent=5 // pred_check_branch
        %268 = sbr.rel (%p266) target = $region36
      $region35: #{tpu_custom_call.1} parent=5 // pred_region
        // Predicated region
        $region37: #{tpu_custom_call.1} parent=35 // pred_check
          %p269 = pneg %p55
        $region38: #{tpu_custom_call.1} parent=35 // pred_check_branch
          %271 = sbr.rel (%p269) target = $region40
        $region39: #{tpu_custom_call.1} parent=35 // pred_region
          %p272 = scmp.lt.s32.totalorder %s21, 1
          %s273 = scalar_select %p272, %s21, 1
          %p274 = scmp.lt.s32.totalorder %s22, 1
          %s275 = scalar_select %p274, %s22, 1
          %s276 = smul.addr %s273, 2
          %s277 = sadd.s32 %s275, %s276
          %s278 = smul.addr %s277, 8
          %s279 = scalar_lea.vmem %s0, %s278
        $region40: #{tpu_custom_call.1} parent=35 // pred_fallthru
          _
        // Predicated region
        $region41: #{tpu_custom_call.1} parent=35 // pred_check
          %p280 = pneg %p87
        $region42: #{tpu_custom_call.1} parent=35 // pred_check_branch
          %282 = sbr.rel (%p280) target = $region44
        $region43: #{tpu_custom_call.1} parent=35 // pred_region
          %p283 = scmp.lt.s32.totalorder %s23, %s22
          %s284 = scalar_select %p283, %s23, %s22
          %p285 = scmp.lt.s32.totalorder %s21, 1
          %s286 = scalar_select %p285, %s21, 1
          %p287 = scmp.lt.s32.totalorder %s284, 1
          %s288 = scalar_select %p287, %s284, 1
          %s289 = smul.addr %s286, 2
          %s290 = sadd.s32 %s288, %s289
          %s291 = smul.addr %s290, 8
          %s292 = scalar_lea.vmem %s1, %s291
          %p293 = scmp.lt.s32.totalorder %s23, %s22
          %s294 = scalar_select %p293, %s23, %s22
        $region44: #{tpu_custom_call.1} parent=35 // pred_fallthru
          _
      $region36: #{tpu_custom_call.1} parent=5 // pred_fallthru
        _
      %p295 = scmp.le.s32.totalorder 1, %s14
      %p296 = scmp.lt.s32.totalorder %s14, 9
      %p297 = pnand %p295, %p296
      %p298 = pneg %p297
      // Predicated region
      $region45: #{tpu_custom_call.1} parent=5 // pred_check
        _
      $region46: #{tpu_custom_call.1} parent=5 // pred_check_branch
        %300 = sbr.rel (%p297) target = $region48
      $region47: #{tpu_custom_call.1} parent=5 // pred_region
        %s301 = ssub.s32 %s14, 1
        // Predicated region
        $region49: #{tpu_custom_call.1} parent=47 // pred_check
          %p302 = pneg %p198
        $region50: #{tpu_custom_call.1} parent=47 // pred_check_branch
          %304 = sbr.rel (%p302) target = $region52
        $region51: #{tpu_custom_call.1} parent=47 // pred_region
          %306 = dma.done [#allocation6], 128
        $region52: #{tpu_custom_call.1} parent=47 // pred_fallthru
          _
        %p307 = scmp.lt.s32.totalorder %s24, 1
        %s308 = scalar_select %p307, %s24, 1
        %p309 = scmp.lt.s32.totalorder %s25, 1
        %s310 = scalar_select %p309, %s25, 1
        %s311 = smul.addr %s308, 2
        %s312 = sadd.s32 %s310, %s311
        %s313 = smul.addr %s312, 8
        %s314 = scalar_lea.vmem %s0, %s313
        %p315 = pneg %p61
        %p316 = pneg %p58
        %p317 = scmp.lt.s32.totalorder %s26, %s25
        %s318 = scalar_select %p317, %s26, %s25
        %p319 = scmp.lt.s32.totalorder %s24, 1
        %s320 = scalar_select %p319, %s24, 1
        %p321 = scmp.lt.s32.totalorder %s318, 1
        %s322 = scalar_select %p321, %s318, 1
        %s323 = smul.addr %s320, 2
        %s324 = sadd.s32 %s322, %s323
        %s325 = smul.addr %s324, 8
        %s326 = scalar_lea.vmem %s1, %s325
        %p327 = pneg %p93
        %p328 = pneg %p90
        %p329 = pneg %p114
        %p330 = pneg %p111
        %p331 = pneg %p135
        %p332 = pneg %p132
        %p333 = pneg %p156
        %p334 = pneg %p153
        %p335 = pneg %p177
        %p336 = pneg %p174
        %p337 = pneg %p198
        %p338 = pneg %p195
        %p339 = pneg %p226
        %p340 = pneg %p223
        %p341 = scmp.lt.s32.totalorder %s24, 1
        %s342 = scalar_select %p341, %s24, 1
        %p343 = scmp.lt.s32.totalorder %s25, 1
        %s344 = scalar_select %p343, %s25, 1
        %s345 = smul.addr %s342, 2
        %s346 = sadd.s32 %s344, %s345
        %s347 = smul.addr %s346, 8
        %s348 = scalar_lea.vmem %s7, %s347
        %p349 = scmp.lt.s32.totalorder %s24, 1
        %s350 = scalar_select %p349, %s24, 1
        %p351 = scmp.lt.s32.totalorder %s25, 1
        %s352 = scalar_select %p351, %s25, 1
        %s353 = smul.addr %s350, 2
        %s354 = sadd.s32 %s352, %s353
        %s355 = smul.addr %s354, 8
        %s356 = scalar_lea.vmem %s0, %s355
        %p357 = scmp.lt.s32.totalorder %s26, %s25
        %s358 = scalar_select %p357, %s26, %s25
        %p359 = scmp.lt.s32.totalorder %s24, 1
        %s360 = scalar_select %p359, %s24, 1
        %p361 = scmp.lt.s32.totalorder %s358, 1
        %s362 = scalar_select %p361, %s358, 1
        %s363 = smul.addr %s360, 2
        %s364 = sadd.s32 %s362, %s363
        %s365 = smul.addr %s364, 8
        %s366 = scalar_lea.vmem %s1, %s365
        %p367 = scmp.lt.s32.totalorder %s26, %s25
        %s368 = scalar_select %p367, %s26, %s25
        %p369 = scmp.lt.s32.totalorder %s24, 1
        %s370 = scalar_select %p369, %s24, 1
        %p371 = scmp.lt.s32.totalorder %s25, 1
        %s372 = scalar_select %p371, %s25, 1
        %s373 = smul.addr %s370, 2
        %s374 = sadd.s32 %s372, %s373
        %s375 = smul.addr %s374, 8
        %s376 = scalar_lea.vmem %s7, %s375
        %p378 = scmp.eq.s32.totalorder %s26, 0
        // Predicated region
        $region53: #{tpu_custom_call.1} parent=47 // pred_check
          %p379 = pneg %p378
        $region54: #{tpu_custom_call.1} parent=47 // pred_check_branch
          %381 = sbr.rel (%p379) target = $region56
        $region55: #{tpu_custom_call.1} parent=47 // pred_region
          %vm382 = vcmask 7168
          %383 = vst.msk [vmem:[#allocation2] sm:$0xff] %vm382, -1e+30
          %384 = vst.msk [vmem:[#allocation2 + $0x8] sm:$0xff] %vm382, -1e+30
          %385 = vst.msk [vmem:[#allocation2 + $0x10] sm:$0xff] %vm382, -1e+30
          %386 = vst.msk [vmem:[#allocation2 + $0x18] sm:$0xff] %vm382, -1e+30
          %387 = vst.msk [vmem:[#allocation3] sm:$0xff] %vm382, 0.0
          %388 = vst.msk [vmem:[#allocation3 + $0x8] sm:$0xff] %vm382, 0.0
          %389 = vst.msk [vmem:[#allocation3 + $0x10] sm:$0xff] %vm382, 0.0
          %390 = vst.msk [vmem:[#allocation3 + $0x18] sm:$0xff] %vm382, 0.0
          %vm391 = vcmask 31744
          %392 = vst.msk [vmem:[#allocation4] sm:$0xff] %vm391, 0.0
          %393 = vst.msk [vmem:[#allocation4 + $0x8] sm:$0xff] %vm391, 0.0
          %394 = vst.msk [vmem:[#allocation4 + $0x10] sm:$0xff] %vm391, 0.0
          %395 = vst.msk [vmem:[#allocation4 + $0x18] sm:$0xff] %vm391, 0.0
        $region56: #{tpu_custom_call.1} parent=47 // pred_fallthru
          _
        %p396 = scmp.le.s32.totalorder %s26, %s25
        // Predicated region
        $region57: #{tpu_custom_call.1} parent=47 // pred_check
          %p397 = pneg %p396
        $region58: #{tpu_custom_call.1} parent=47 // pred_check_branch
          %399 = sbr.rel (%p397) target = $region60
        $region59: #{tpu_custom_call.1} parent=47 // pred_region
          %v400 = vld [vmem:[%s356] sm:$0xff]
          %v401 = vld [vmem:[%s366] sm:$0xff]
          %v402 = vld [vmem:[%s2] sm:$0xff]
          %v403 = vld [vmem:[%s2 + $0x8] sm:$0xff]
          %v404 = vld [vmem:[%s2 + $0x10] sm:$0x1]
          %v405 = vperm.slane %v404, 0
          %vm406 = vcmask 130048
          %v408 = vsel %vm406, %v400, 0
          %410 = vmatpush.msra.mxu0 0.0
          %411 = vmatpush.msra.mxu0 0.0
          %412 = vmatpush.msra.mxu0 0.0
          %413 = vmatpush.msra.mxu0 0.0
          %414 = vmatpush.msra.mxu0 0.0
          %415 = vmatpush.msra.mxu0 0.0
          %416 = vmatpush.msra.mxu0 0.0
          %417 = vmatpush.msra.mxu0 0.0
          %418 = vmatpush.msra.mxu0 0.0
          %419 = vmatpush.msra.mxu0 0.0
          %420 = vmatpush.msra.mxu0 0.0
          %421 = vmatpush.msra.mxu0 0.0
          %422 = vmatpush.msra.mxu0 0.0
          %423 = vmatpush.msra.mxu0 0.0
          %424 = vmatpush.msra.mxu0 %v403
          %425 = vmatpush.msra.mxu0 %v402
          %426 = vmatmul.f32.gmra.mxu0 %v408
          %v427 = vpop.f32.mrf.mxu0
          %v428 = vadd.f32 %v405, %v427
          %429 = vdwg.mxu0
          %432 = vrot.lane.b32.xlu0 %v402, 112
          %v433 = vpop.permute.xlu0 %432
          %434 = vrot.lane.b32.xlu0 %v403, 112
          %v435 = vpop.permute.xlu0 %434
          %439 = vrot.lane.b32.xlu0 %v405, 112
          %v440 = vpop.permute.xlu0 %439
          %v443 = vsel %vm406, %v401, 0
          %445 = vmatpush.msra.mxu0 0.0
          %446 = vmatpush.msra.mxu0 0.0
          %447 = vmatpush.msra.mxu0 0.0
          %448 = vmatpush.msra.mxu0 0.0
          %449 = vmatpush.msra.mxu0 0.0
          %450 = vmatpush.msra.mxu0 0.0
          %451 = vmatpush.msra.mxu0 0.0
          %452 = vmatpush.msra.mxu0 0.0
          %453 = vmatpush.msra.mxu0 0.0
          %454 = vmatpush.msra.mxu0 0.0
          %455 = vmatpush.msra.mxu0 0.0
          %456 = vmatpush.msra.mxu0 0.0
          %457 = vmatpush.msra.mxu0 0.0
          %458 = vmatpush.msra.mxu0 0.0
          %459 = vmatpush.msra.mxu0 %v435
          %460 = vmatpush.msra.mxu0 %v433
          %461 = vmatmul.f32.gmra.mxu0 %v443
          %v462 = vpop.f32.mrf.mxu0
          %v463 = vadd.f32 %v440, %v462
          %464 = vdwg.mxu0
          %v465 = vpack.c.bf16 %v428, %v428
          %467 = vrot.lane.b32.xlu0 %v465, 124
          %v468 = vpop.permute.xlu0 %467
          %469 = vrot.lane.b32.xlu0 %v465, 120
          %v470 = vpop.permute.xlu0 %469
          %471 = vrot.lane.b32.xlu0 %v465, 116
          %v472 = vpop.permute.xlu0 %471
          %v475 = vpack.i.b16 %v468, %v465
          %v476 = vshrl.u32 %v465, 16
          %v477 = vshrl.u32 %v468, 16
          %v478 = vpack.i.b16 %v477, %v476
          %v481 = vpack.i.b16 %v472, %v470
          %v482 = vshrl.u32 %v470, 16
          %v483 = vshrl.u32 %v472, 16
          %v484 = vpack.i.b16 %v483, %v482
          %v487 = vunpack.c.l.s4 1983009808
          %v488 = vunpack.c.0.s8 %v487
          %v489 = vperm.slane %v475, %v488
          %v492 = vunpack.c.l.s4 1983009808
          %v493 = vunpack.c.0.s8 %v492
          %v494 = vperm.slane %v481, %v493
          %v495 = vrot.slane %v494, 4
          %vm496 = vcmask 1047556
          %v497 = vsel %vm496, %v495, %v489
          %v498 = vrot.slane %v489, 4
          %v499 = vsel %vm496, %v494, %v498
          %v501 = vunpack.c.l.s4 1934713408
          %v502 = vunpack.c.0.s8 %v501
          %v503 = vperm.slane %v497, %v502
          %v505 = vunpack.c.l.s4 1934713408
          %v506 = vunpack.c.0.s8 %v505
          %v507 = vperm.slane %v499, %v506
          %v508 = vrot.slane %v503, 4
          %v509 = vsel %vm496, 0, %v508
          %v510 = vrot.slane %v507, 4
          %v511 = vsel %vm496, 0, %v510
          %v514 = vunpack.c.l.s4 1983009808
          %v515 = vunpack.c.0.s8 %v514
          %v516 = vperm.slane %v478, %v515
          %v519 = vunpack.c.l.s4 1983009808
          %v520 = vunpack.c.0.s8 %v519
          %v521 = vperm.slane %v484, %v520
          %v522 = vrot.slane %v521, 4
          %v523 = vsel %vm496, %v522, %v516
          %v524 = vrot.slane %v516, 4
          %v525 = vsel %vm496, %v521, %v524
          %v527 = vunpack.c.l.s4 1934713408
          %v528 = vunpack.c.0.s8 %v527
          %v529 = vperm.slane %v523, %v528
          %v531 = vunpack.c.l.s4 1934713408
          %v532 = vunpack.c.0.s8 %v531
          %v533 = vperm.slane %v525, %v532
          %v534 = vrot.slane %v529, 4
          %v535 = vsel %vm496, 0, %v534
          %v536 = vrot.slane %v533, 4
          %v537 = vsel %vm496, 0, %v536
          %v538 = vsel %vm496, %v510, %v503
          %v540 = vunpack.c.l.s4 1983009808
          %v541 = vunpack.c.0.s8 %v540
          %v542 = vperm.slane %v538, %v541
          %v543 = vrot.slane %v511, 4
          %v544 = vsel %vm496, %v543, %v509
          %v546 = vunpack.c.l.s4 1983009808
          %v547 = vunpack.c.0.s8 %v546
          %v548 = vperm.slane %v544, %v547
          %v549 = vrot.slane %v548, 4
          %v550 = vsel %vm496, %v549, %v542
          %v552 = vunpack.c.l.s4 1934713408
          %v553 = vunpack.c.0.s8 %v552
          %v554 = vperm.slane %v550, %v553
          %v555 = vrot.slane %v554, 4
          %v556 = vsel %vm496, 0, %v555
          %v557 = vsel %vm496, %v536, %v529
          %v559 = vunpack.c.l.s4 1983009808
          %v560 = vunpack.c.0.s8 %v559
          %v561 = vperm.slane %v557, %v560
          %v562 = vrot.slane %v537, 4
          %v563 = vsel %vm496, %v562, %v535
          %v565 = vunpack.c.l.s4 1983009808
          %v566 = vunpack.c.0.s8 %v565
          %v567 = vperm.slane %v563, %v566
          %v568 = vrot.slane %v567, 4
          %v569 = vsel %vm496, %v568, %v561
          %v571 = vunpack.c.l.s4 1934713408
          %v572 = vunpack.c.0.s8 %v571
          %v573 = vperm.slane %v569, %v572
          %v574 = vrot.slane %v573, 4
          %v575 = vsel %vm496, 0, %v574
          %v578 = vpack.i.b16 %v573, %v554
          %v579 = vshrl.u32 %v554, 16
          %v580 = vshrl.u32 %v573, 16
          %v581 = vpack.i.b16 %v580, %v579
          %v584 = vpack.i.b16 %v575, %v556
          %v585 = vshrl.u32 %v556, 16
          %v586 = vshrl.u32 %v575, 16
          %v587 = vpack.i.b16 %v586, %v585
          %v588 = vpack.c.bf16 %v463, %v463
          %590 = vrot.lane.b32.xlu0 %v588, 124
          %v591 = vpop.permute.xlu0 %590
          %592 = vrot.lane.b32.xlu0 %v588, 120
          %v593 = vpop.permute.xlu0 %592
          %594 = vrot.lane.b32.xlu0 %v588, 116
          %v595 = vpop.permute.xlu0 %594
          %v598 = vpack.i.b16 %v591, %v588
          %v599 = vshrl.u32 %v588, 16
          %v600 = vshrl.u32 %v591, 16
          %v601 = vpack.i.b16 %v600, %v599
          %v604 = vpack.i.b16 %v595, %v593
          %v605 = vshrl.u32 %v593, 16
          %v606 = vshrl.u32 %v595, 16
          %v607 = vpack.i.b16 %v606, %v605
          %v610 = vunpack.c.l.s4 1983009808
          %v611 = vunpack.c.0.s8 %v610
          %v612 = vperm.slane %v598, %v611
          %v615 = vunpack.c.l.s4 1983009808
          %v616 = vunpack.c.0.s8 %v615
          %v617 = vperm.slane %v604, %v616
          %v618 = vrot.slane %v617, 4
          %v619 = vsel %vm496, %v618, %v612
          %v620 = vrot.slane %v612, 4
          %v621 = vsel %vm496, %v617, %v620
          %v623 = vunpack.c.l.s4 1934713408
          %v624 = vunpack.c.0.s8 %v623
          %v625 = vperm.slane %v619, %v624
          %v627 = vunpack.c.l.s4 1934713408
          %v628 = vunpack.c.0.s8 %v627
          %v629 = vperm.slane %v621, %v628
          %v630 = vrot.slane %v625, 4
          %v631 = vsel %vm496, 0, %v630
          %v632 = vrot.slane %v629, 4
          %v633 = vsel %vm496, 0, %v632
          %v636 = vunpack.c.l.s4 1983009808
          %v637 = vunpack.c.0.s8 %v636
          %v638 = vperm.slane %v601, %v637
          %v641 = vunpack.c.l.s4 1983009808
          %v642 = vunpack.c.0.s8 %v641
          %v643 = vperm.slane %v607, %v642
          %v644 = vrot.slane %v643, 4
          %v645 = vsel %vm496, %v644, %v638
          %v646 = vrot.slane %v638, 4
          %v647 = vsel %vm496, %v643, %v646
          %v649 = vunpack.c.l.s4 1934713408
          %v650 = vunpack.c.0.s8 %v649
          %v651 = vperm.slane %v645, %v650
          %v653 = vunpack.c.l.s4 1934713408
          %v654 = vunpack.c.0.s8 %v653
          %v655 = vperm.slane %v647, %v654
          %v656 = vrot.slane %v651, 4
          %v657 = vsel %vm496, 0, %v656
          %v658 = vrot.slane %v655, 4
          %v659 = vsel %vm496, 0, %v658
          %v660 = vsel %vm496, %v632, %v625
          %v662 = vunpack.c.l.s4 1983009808
          %v663 = vunpack.c.0.s8 %v662
          %v664 = vperm.slane %v660, %v663
          %v665 = vrot.slane %v633, 4
          %v666 = vsel %vm496, %v665, %v631
          %v668 = vunpack.c.l.s4 1983009808
          %v669 = vunpack.c.0.s8 %v668
          %v670 = vperm.slane %v666, %v669
          %v671 = vrot.slane %v670, 4
          %v672 = vsel %vm496, %v671, %v664
          %v674 = vunpack.c.l.s4 1934713408
          %v675 = vunpack.c.0.s8 %v674
          %v676 = vperm.slane %v672, %v675
          %v677 = vrot.slane %v676, 4
          %v678 = vsel %vm496, 0, %v677
          %v679 = vsel %vm496, %v658, %v651
          %v681 = vunpack.c.l.s4 1983009808
          %v682 = vunpack.c.0.s8 %v681
          %v683 = vperm.slane %v679, %v682
          %v684 = vrot.slane %v659, 4
          %v685 = vsel %vm496, %v684, %v657
          %v687 = vunpack.c.l.s4 1983009808
          %v688 = vunpack.c.0.s8 %v687
          %v689 = vperm.slane %v685, %v688
          %v690 = vrot.slane %v689, 4
          %v691 = vsel %vm496, %v690, %v683
          %v693 = vunpack.c.l.s4 1934713408
          %v694 = vunpack.c.0.s8 %v693
          %v695 = vperm.slane %v691, %v694
          %v696 = vrot.slane %v695, 4
          %v697 = vsel %vm496, 0, %v696
          %v700 = vpack.i.b16 %v695, %v676
          %v701 = vshrl.u32 %v676, 16
          %v702 = vshrl.u32 %v695, 16
          %v703 = vpack.i.b16 %v702, %v701
          %v706 = vpack.i.b16 %v697, %v678
          %v707 = vshrl.u32 %v678, 16
          %v708 = vshrl.u32 %v697, 16
          %v709 = vpack.i.b16 %v708, %v707
          %710 = vrot.lane.b32.xlu0 %v588, 112
          %v711 = vpop.permute.xlu0 %710
          %712 = vrot.lane.b32.xlu0 %v591, 112
          %v713 = vpop.permute.xlu0 %712
          %714 = vrot.lane.b32.xlu0 %v593, 112
          %v715 = vpop.permute.xlu0 %714
          %716 = vrot.lane.b32.xlu0 %v595, 112
          %v717 = vpop.permute.xlu0 %716
          %v720 = vpack.i.b16 %v713, %v711
          %v721 = vshrl.u32 %v711, 16
          %v722 = vshrl.u32 %v713, 16
          %v723 = vpack.i.b16 %v722, %v721
          %v726 = vpack.i.b16 %v717, %v715
          %v727 = vshrl.u32 %v715, 16
          %v728 = vshrl.u32 %v717, 16
          %v729 = vpack.i.b16 %v728, %v727
          %v732 = vunpack.c.l.s4 1983009808
          %v733 = vunpack.c.0.s8 %v732
          %v734 = vperm.slane %v720, %v733
          %v737 = vunpack.c.l.s4 1983009808
          %v738 = vunpack.c.0.s8 %v737
          %v739 = vperm.slane %v726, %v738
          %v740 = vrot.slane %v739, 4
          %v741 = vsel %vm496, %v740, %v734
          %v742 = vrot.slane %v734, 4
          %v743 = vsel %vm496, %v739, %v742
          %v745 = vunpack.c.l.s4 1934713408
          %v746 = vunpack.c.0.s8 %v745
          %v747 = vperm.slane %v741, %v746
          %v749 = vunpack.c.l.s4 1934713408
          %v750 = vunpack.c.0.s8 %v749
          %v751 = vperm.slane %v743, %v750
          %v752 = vrot.slane %v747, 4
          %v753 = vsel %vm496, 0, %v752
          %v754 = vrot.slane %v751, 4
          %v755 = vsel %vm496, 0, %v754
          %v758 = vunpack.c.l.s4 1983009808
          %v759 = vunpack.c.0.s8 %v758
          %v760 = vperm.slane %v723, %v759
          %v763 = vunpack.c.l.s4 1983009808
          %v764 = vunpack.c.0.s8 %v763
          %v765 = vperm.slane %v729, %v764
          %v766 = vrot.slane %v765, 4
          %v767 = vsel %vm496, %v766, %v760
          %v768 = vrot.slane %v760, 4
          %v769 = vsel %vm496, %v765, %v768
          %v771 = vunpack.c.l.s4 1934713408
          %v772 = vunpack.c.0.s8 %v771
          %v773 = vperm.slane %v767, %v772
          %v775 = vunpack.c.l.s4 1934713408
          %v776 = vunpack.c.0.s8 %v775
          %v777 = vperm.slane %v769, %v776
          %v778 = vrot.slane %v773, 4
          %v779 = vsel %vm496, 0, %v778
          %v780 = vrot.slane %v777, 4
          %v781 = vsel %vm496, 0, %v780
          %v782 = vsel %vm496, %v754, %v747
          %v784 = vunpack.c.l.s4 1983009808
          %v785 = vunpack.c.0.s8 %v784
          %v786 = vperm.slane %v782, %v785
          %v787 = vrot.slane %v755, 4
          %v788 = vsel %vm496, %v787, %v753
          %v790 = vunpack.c.l.s4 1983009808
          %v791 = vunpack.c.0.s8 %v790
          %v792 = vperm.slane %v788, %v791
          %v793 = vrot.slane %v792, 4
          %v794 = vsel %vm496, %v793, %v786
          %v796 = vunpack.c.l.s4 1934713408
          %v797 = vunpack.c.0.s8 %v796
          %v798 = vperm.slane %v794, %v797
          %v799 = vrot.slane %v798, 4
          %v800 = vsel %vm496, 0, %v799
          %v801 = vsel %vm496, %v780, %v773
          %v803 = vunpack.c.l.s4 1983009808
          %v804 = vunpack.c.0.s8 %v803
          %v805 = vperm.slane %v801, %v804
          %v806 = vrot.slane %v781, 4
          %v807 = vsel %vm496, %v806, %v779
          %v809 = vunpack.c.l.s4 1983009808
          %v810 = vunpack.c.0.s8 %v809
          %v811 = vperm.slane %v807, %v810
          %v812 = vrot.slane %v811, 4
          %v813 = vsel %vm496, %v812, %v805
          %v815 = vunpack.c.l.s4 1934713408
          %v816 = vunpack.c.0.s8 %v815
          %v817 = vperm.slane %v813, %v816
          %v818 = vrot.slane %v817, 4
          %v819 = vsel %vm496, 0, %v818
          %v822 = vpack.i.b16 %v817, %v798
          %v823 = vshrl.u32 %v798, 16
          %v824 = vshrl.u32 %v817, 16
          %v825 = vpack.i.b16 %v824, %v823
          %v828 = vpack.i.b16 %v819, %v800
          %v829 = vshrl.u32 %v800, 16
          %v830 = vshrl.u32 %v819, 16
          %v831 = vpack.i.b16 %v830, %v829
          %vm832 = vcmask 31744
          %v834 = vsel %vm832, %v578, 0
          %v837 = vsel %vm832, %v700, 0
          %839 = vmatpush.bf16.xpose.msra.mxu0 0
          %840 = vmatpush.bf16.xpose.msra.mxu0 0
          %841 = vmatpush.bf16.xpose.msra.mxu0 0
          %842 = vmatpush.bf16.xpose.msra.mxu0 0
          %843 = vmatpush.bf16.xpose.msra.mxu0 0
          %844 = vmatpush.bf16.xpose.msra.mxu0 0
          %845 = vmatpush.bf16.xpose.msra.mxu0 0
          %846 = vmatpush.bf16.xpose.msra.mxu0 %v837
          %847 = vmatmul.bf16.gmra.mxu0 %v834
          %v848 = vpop.f32.mrf.mxu0
          %v849 = vadd.f32 0.0, %v848
          %v850 = vpop.f32.mrf.mxu0
          %851 = vdwg.mxu0
          %v853 = vsel %vm832, %v581, 0
          %v856 = vsel %vm832, %v703, 0
          %858 = vmatpush.bf16.xpose.msra.mxu0 0
          %859 = vmatpush.bf16.xpose.msra.mxu0 0
          %860 = vmatpush.bf16.xpose.msra.mxu0 0
          %861 = vmatpush.bf16.xpose.msra.mxu0 0
          %862 = vmatpush.bf16.xpose.msra.mxu0 0
          %863 = vmatpush.bf16.xpose.msra.mxu0 0
          %864 = vmatpush.bf16.xpose.msra.mxu0 0
          %865 = vmatpush.bf16.xpose.msra.mxu0 %v856
          %866 = vmatmul.bf16.gmra.mxu0 %v853
          %v867 = vpop.f32.mrf.mxu0
          %v868 = vadd.f32 0.0, %v867
          %v869 = vpop.f32.mrf.mxu0
          %870 = vdwg.mxu0
          %v872 = vsel %vm832, %v584, 0
          %v875 = vsel %vm832, %v706, 0
          %877 = vmatpush.bf16.xpose.msra.mxu0 0
          %878 = vmatpush.bf16.xpose.msra.mxu0 0
          %879 = vmatpush.bf16.xpose.msra.mxu0 0
          %880 = vmatpush.bf16.xpose.msra.mxu0 0
          %881 = vmatpush.bf16.xpose.msra.mxu0 0
          %882 = vmatpush.bf16.xpose.msra.mxu0 0
          %883 = vmatpush.bf16.xpose.msra.mxu0 0
          %884 = vmatpush.bf16.xpose.msra.mxu0 %v875
          %885 = vmatmul.bf16.gmra.mxu0 %v872
          %v886 = vpop.f32.mrf.mxu0
          %v887 = vadd.f32 0.0, %v886
          %v888 = vpop.f32.mrf.mxu0
          %889 = vdwg.mxu0
          %v891 = vsel %vm832, %v587, 0
          %v894 = vsel %vm832, %v709, 0
          %896 = vmatpush.bf16.xpose.msra.mxu0 0
          %897 = vmatpush.bf16.xpose.msra.mxu0 0
          %898 = vmatpush.bf16.xpose.msra.mxu0 0
          %899 = vmatpush.bf16.xpose.msra.mxu0 0
          %900 = vmatpush.bf16.xpose.msra.mxu0 0
          %901 = vmatpush.bf16.xpose.msra.mxu0 0
          %902 = vmatpush.bf16.xpose.msra.mxu0 0
          %903 = vmatpush.bf16.xpose.msra.mxu0 %v894
          %904 = vmatmul.bf16.gmra.mxu0 %v891
          %v905 = vpop.f32.mrf.mxu0
          %v906 = vadd.f32 0.0, %v905
          %v907 = vpop.f32.mrf.mxu0
          %908 = vdwg.mxu0
          %s909 = smul.u32 %s25, 8
          %v910 = vlaneseq
          %v911 = vshrl.u32 %v910, 7
          %v912 = vstv %s909
          %v913 = vadd.s32 %v912, %v911
          %s914 = smul.u32 %s26, 8
          %v915 = vlaneseq
          %v916 = vand.u32 %v915, 127
          %v917 = vstv %s914
          %v918 = vadd.s32 %v917, %v916
          %vm919 = vcmp.le.s32.totalorder %v918, %v913
          %v920 = vsel %vm919, 1, 0
          %vm921 = vcmp.eq.s32.totalorder %v920, 1
          %v922 = vsel %vm921, %v849, -1e+30
          %v923 = vsel %vm921, %v868, -1e+30
          %v924 = vsel %vm921, %v887, -1e+30
          %v925 = vsel %vm921, %v906, -1e+30
          %v926 = vld [vmem:[#allocation2] sm:$0xff]
          %v927 = vld [vmem:[#allocation2 + $0x8] sm:$0xff]
          %v928 = vld [vmem:[#allocation2 + $0x10] sm:$0xff]
          %v929 = vld [vmem:[#allocation2 + $0x18] sm:$0xff]
          %vm930 = vcmask 64512
          %v931 = vsel %vm930, %v922, -inf
          %932 = vmax.xlane.f32.xlu0 %v931
          %v933 = vpop.xlane.xlu0 %932
          %v934 = vsel %vm930, %v923, -inf
          %935 = vmax.xlane.f32.xlu0 %v934
          %v936 = vpop.xlane.xlu0 %935
          %v937 = vsel %vm930, %v924, -inf
          %938 = vmax.xlane.f32.xlu0 %v937
          %v939 = vpop.xlane.xlu0 %938
          %v940 = vsel %vm930, %v925, -inf
          %941 = vmax.xlane.f32.xlu0 %v940
          %v942 = vpop.xlane.xlu0 %941
          %v943 = vmax.f32 %v926, %v933
          %v944 = vmax.f32 %v927, %v936
          %v945 = vmax.f32 %v928, %v939
          %v946 = vmax.f32 %v929, %v942
          %v947 = vsub.f32 %v926, %v943
          %v948 = vsub.f32 %v927, %v944
          %v949 = vsub.f32 %v928, %v945
          %v950 = vsub.f32 %v929, %v946
          %v951 = vmul.f32 %v947, 1.442695
          %v952 = vpow.pop %v951
          %v953 = vmul.f32 %v948, 1.442695
          %v954 = vpow.pop %v953
          %v955 = vmul.f32 %v949, 1.442695
          %v956 = vpow.pop %v955
          %v957 = vmul.f32 %v950, 1.442695
          %v958 = vpow.pop %v957
          %960 = vset.pattern.permute.xlu0 0
          %961 = vperm.xlu0 %960, %v943
          %v962 = vpop.permute.xlu0 %961
          %965 = vset.pattern.permute.xlu0 0
          %966 = vperm.xlu0 %965, %v944
          %v967 = vpop.permute.xlu0 %966
          %970 = vset.pattern.permute.xlu0 0
          %971 = vperm.xlu0 %970, %v945
          %v972 = vpop.permute.xlu0 %971
          %975 = vset.pattern.permute.xlu0 0
          %976 = vperm.xlu0 %975, %v946
          %v977 = vpop.permute.xlu0 %976
          %v979 = vsub.f32 %v922, %v962
          %v980 = vsub.f32 %v923, %v967
          %v981 = vsub.f32 %v924, %v972
          %v982 = vsub.f32 %v925, %v977
          %v983 = vmul.f32 %v979, 1.442695
          %v984 = vpow.pop %v983
          %v985 = vmul.f32 %v980, 1.442695
          %v986 = vpow.pop %v985
          %v987 = vmul.f32 %v981, 1.442695
          %v988 = vpow.pop %v987
          %v989 = vmul.f32 %v982, 1.442695
          %v990 = vpow.pop %v989
          %v991 = vld [vmem:[#allocation3] sm:$0xff]
          %v992 = vld [vmem:[#allocation3 + $0x8] sm:$0xff]
          %v993 = vld [vmem:[#allocation3 + $0x10] sm:$0xff]
          %v994 = vld [vmem:[#allocation3 + $0x18] sm:$0xff]
          %v995 = vmul.f32 %v952, %v991
          %v996 = vmul.f32 %v954, %v992
          %v997 = vmul.f32 %v956, %v993
          %v998 = vmul.f32 %v958, %v994
          %v999 = vsel %vm930, %v984, 0.0
          %1000 = vadd.xlane.f32.xlu0 %v999
          %v1001 = vpop.xlane.xlu0 %1000
          %v1002 = vsel %vm930, %v986, 0.0
          %1003 = vadd.xlane.f32.xlu0 %v1002
          %v1004 = vpop.xlane.xlu0 %1003
          %v1005 = vsel %vm930, %v988, 0.0
          %1006 = vadd.xlane.f32.xlu0 %v1005
          %v1007 = vpop.xlane.xlu0 %1006
          %v1008 = vsel %vm930, %v990, 0.0
          %1009 = vadd.xlane.f32.xlu0 %v1008
          %v1010 = vpop.xlane.xlu0 %1009
          %v1011 = vadd.f32 %v995, %v1001
          %v1012 = vadd.f32 %v996, %v1004
          %v1013 = vadd.f32 %v997, %v1007
          %v1014 = vadd.f32 %v998, %v1010
          %vm1015 = vcmask 7168
          %1016 = vst.msk [vmem:[#allocation3] sm:$0xff] %vm1015, %v1011
          %1017 = vst.msk [vmem:[#allocation3 + $0x8] sm:$0xff] %vm1015, %v1012
          %1018 = vst.msk [vmem:[#allocation3 + $0x10] sm:$0xff] %vm1015, %v1013
          %1019 = vst.msk [vmem:[#allocation3 + $0x18] sm:$0xff] %vm1015, %v1014
          %v1020 = vld [vmem:[#allocation4] sm:$0xff]
          %v1021 = vld [vmem:[#allocation4 + $0x8] sm:$0xff]
          %v1022 = vld [vmem:[#allocation4 + $0x10] sm:$0xff]
          %v1023 = vld [vmem:[#allocation4 + $0x18] sm:$0xff]
          %1025 = vset.pattern.permute.xlu0 0
          %1026 = vperm.xlu0 %1025, %v952
          %v1027 = vpop.permute.xlu0 %1026
          %1030 = vset.pattern.permute.xlu0 0
          %1031 = vperm.xlu0 %1030, %v954
          %v1032 = vpop.permute.xlu0 %1031
          %1035 = vset.pattern.permute.xlu0 0
          %1036 = vperm.xlu0 %1035, %v956
          %v1037 = vpop.permute.xlu0 %1036
          %1040 = vset.pattern.permute.xlu0 0
          %1041 = vperm.xlu0 %1040, %v958
          %v1042 = vpop.permute.xlu0 %1041
          %v1044 = vmul.f32 %v1027, %v1020
          %v1045 = vmul.f32 %v1032, %v1021
          %v1046 = vmul.f32 %v1037, %v1022
          %v1047 = vmul.f32 %v1042, %v1023
          %v1048 = vpack.c.bf16 %v984, %v984
          %v1049 = vpack.c.bf16 %v986, %v986
          %v1050 = vpack.c.bf16 %v988, %v988
          %v1051 = vpack.c.bf16 %v990, %v990
          %v1053 = vsel %vm930, %v1048, 0
          %vm1055 = vcmask 1043456
          %v1057 = vsel %vm1055, %v822, 0
          %1059 = vmatpush.bf16.msra.mxu0 0
          %1060 = vmatpush.bf16.msra.mxu0 0
          %1061 = vmatpush.bf16.msra.mxu0 0
          %1062 = vmatpush.bf16.msra.mxu0 0
          %1063 = vmatpush.bf16.msra.mxu0 0
          %1064 = vmatpush.bf16.msra.mxu0 0
          %1065 = vmatpush.bf16.msra.mxu0 0
          %1066 = vmatpush.bf16.msra.mxu0 %v1057
          %1067 = vmatmul.bf16.gmra.mxu0 %v1053
          %v1068 = vpop.f32.mrf.mxu0
          %v1069 = vadd.f32 0.0, %v1068
          %v1070 = vpop.f32.mrf.mxu0
          %1071 = vdwg.mxu0
          %v1073 = vsel %vm930, %v1049, 0
          %v1076 = vsel %vm1055, %v825, 0
          %1078 = vmatpush.bf16.msra.mxu0 0
          %1079 = vmatpush.bf16.msra.mxu0 0
          %1080 = vmatpush.bf16.msra.mxu0 0
          %1081 = vmatpush.bf16.msra.mxu0 0
          %1082 = vmatpush.bf16.msra.mxu0 0
          %1083 = vmatpush.bf16.msra.mxu0 0
          %1084 = vmatpush.bf16.msra.mxu0 0
          %1085 = vmatpush.bf16.msra.mxu0 %v1076
          %1086 = vmatmul.bf16.gmra.mxu0 %v1073
          %v1087 = vpop.f32.mrf.mxu0
          %v1088 = vadd.f32 0.0, %v1087
          %v1089 = vpop.f32.mrf.mxu0
          %1090 = vdwg.mxu0
          %v1092 = vsel %vm930, %v1050, 0
          %v1095 = vsel %vm1055, %v828, 0
          %1097 = vmatpush.bf16.msra.mxu0 0
          %1098 = vmatpush.bf16.msra.mxu0 0
          %1099 = vmatpush.bf16.msra.mxu0 0
          %1100 = vmatpush.bf16.msra.mxu0 0
          %1101 = vmatpush.bf16.msra.mxu0 0
          %1102 = vmatpush.bf16.msra.mxu0 0
          %1103 = vmatpush.bf16.msra.mxu0 0
          %1104 = vmatpush.bf16.msra.mxu0 %v1095
          %1105 = vmatmul.bf16.gmra.mxu0 %v1092
          %v1106 = vpop.f32.mrf.mxu0
          %v1107 = vadd.f32 0.0, %v1106
          %v1108 = vpop.f32.mrf.mxu0
          %1109 = vdwg.mxu0
          %v1111 = vsel %vm930, %v1051, 0
          %v1114 = vsel %vm1055, %v831, 0
          %1116 = vmatpush.bf16.msra.mxu0 0
          %1117 = vmatpush.bf16.msra.mxu0 0
          %1118 = vmatpush.bf16.msra.mxu0 0
          %1119 = vmatpush.bf16.msra.mxu0 0
          %1120 = vmatpush.bf16.msra.mxu0 0
          %1121 = vmatpush.bf16.msra.mxu0 0
          %1122 = vmatpush.bf16.msra.mxu0 0
          %1123 = vmatpush.bf16.msra.mxu0 %v1114
          %1124 = vmatmul.bf16.gmra.mxu0 %v1111
          %v1125 = vpop.f32.mrf.mxu0
          %v1126 = vadd.f32 0.0, %v1125
          %v1127 = vpop.f32.mrf.mxu0
          %1128 = vdwg.mxu0
          %v1129 = vadd.f32 %v1044, %v1069
          %v1130 = vadd.f32 %v1045, %v1088
          %v1131 = vadd.f32 %v1046, %v1107
          %v1132 = vadd.f32 %v1047, %v1126
          %1133 = vst.msk [vmem:[#allocation4] sm:$0xff] %vm832, %v1129
          %1134 = vst.msk [vmem:[#allocation4 + $0x8] sm:$0xff] %vm832, %v1130
          %1135 = vst.msk [vmem:[#allocation4 + $0x10] sm:$0xff] %vm832, %v1131
          %1136 = vst.msk [vmem:[#allocation4 + $0x18] sm:$0xff] %vm832, %v1132
          %1137 = vst.msk [vmem:[#allocation2] sm:$0xff] %vm1015, %v943
          %1138 = vst.msk [vmem:[#allocation2 + $0x8] sm:$0xff] %vm1015, %v944
          %1139 = vst.msk [vmem:[#allocation2 + $0x10] sm:$0xff] %vm1015, %v945
          %1140 = vst.msk [vmem:[#allocation2 + $0x18] sm:$0xff] %vm1015, %v946
        $region60: #{tpu_custom_call.1} parent=47 // pred_fallthru
          _
        %p1141 = scmp.eq.s32.totalorder %s26, 1
        // Predicated region
        $region61: #{tpu_custom_call.1} parent=47 // pred_check
          %p1142 = pneg %p1141
        $region62: #{tpu_custom_call.1} parent=47 // pred_check_branch
          %1144 = sbr.rel (%p1142) target = $region64
        $region63: #{tpu_custom_call.1} parent=47 // pred_region
          %v1145 = vld [vmem:[#allocation4] sm:$0xff]
          %v1146 = vld [vmem:[#allocation4 + $0x8] sm:$0xff]
          %v1147 = vld [vmem:[#allocation4 + $0x10] sm:$0xff]
          %v1148 = vld [vmem:[#allocation4 + $0x18] sm:$0xff]
          %v1149 = vld [vmem:[#allocation3] sm:$0xff]
          %v1150 = vld [vmem:[#allocation3 + $0x8] sm:$0xff]
          %v1151 = vld [vmem:[#allocation3 + $0x10] sm:$0xff]
          %v1152 = vld [vmem:[#allocation3 + $0x18] sm:$0xff]
          %v1153 = vrcp.pop %v1149
          %v1154 = vrcp.pop %v1150
          %v1155 = vrcp.pop %v1151
          %v1156 = vrcp.pop %v1152
          %1158 = vset.pattern.permute.xlu0 0
          %1159 = vperm.xlu0 %1158, %v1153
          %v1160 = vpop.permute.xlu0 %1159
          %1163 = vset.pattern.permute.xlu0 0
          %1164 = vperm.xlu0 %1163, %v1154
          %v1165 = vpop.permute.xlu0 %1164
          %1168 = vset.pattern.permute.xlu0 0
          %1169 = vperm.xlu0 %1168, %v1155
          %v1170 = vpop.permute.xlu0 %1169
          %1173 = vset.pattern.permute.xlu0 0
          %1174 = vperm.xlu0 %1173, %v1156
          %v1175 = vpop.permute.xlu0 %1174
          %v1177 = vmul.f32 %v1145, %v1160
          %v1178 = vmul.f32 %v1146, %v1165
          %v1179 = vmul.f32 %v1147, %v1170
          %v1180 = vmul.f32 %v1148, %v1175
          %v1181 = vrot.slane %v1179, 4
          %vm1182 = vcmask 1047556
          %v1183 = vsel %vm1182, %v1181, %v1177
          %v1184 = vrot.slane %v1177, 4
          %v1185 = vsel %vm1182, %v1179, %v1184
          %v1187 = vunpack.c.l.s4 1983009808
          %v1188 = vunpack.c.0.s8 %v1187
          %v1189 = vperm.slane %v1183, %v1188
          %v1191 = vunpack.c.l.s4 1983009808
          %v1192 = vunpack.c.0.s8 %v1191
          %v1193 = vperm.slane %v1185, %v1192
          %v1194 = vrot.slane %v1180, 4
          %v1195 = vsel %vm1182, %v1194, %v1178
          %v1196 = vrot.slane %v1178, 4
          %v1197 = vsel %vm1182, %v1180, %v1196
          %v1199 = vunpack.c.l.s4 1983009808
          %v1200 = vunpack.c.0.s8 %v1199
          %v1201 = vperm.slane %v1195, %v1200
          %v1203 = vunpack.c.l.s4 1983009808
          %v1204 = vunpack.c.0.s8 %v1203
          %v1205 = vperm.slane %v1197, %v1204
          %v1206 = vrot.slane %v1201, 4
          %v1207 = vsel %vm1182, %v1206, %v1189
          %v1208 = vrot.slane %v1189, 4
          %v1209 = vsel %vm1182, %v1201, %v1208
          %v1211 = vunpack.c.l.s4 1934713408
          %v1212 = vunpack.c.0.s8 %v1211
          %v1213 = vperm.slane %v1207, %v1212
          %v1215 = vunpack.c.l.s4 1934713408
          %v1216 = vunpack.c.0.s8 %v1215
          %v1217 = vperm.slane %v1209, %v1216
          %v1218 = vrot.slane %v1205, 4
          %v1219 = vsel %vm1182, %v1218, %v1193
          %v1220 = vrot.slane %v1193, 4
          %v1221 = vsel %vm1182, %v1205, %v1220
          %v1223 = vunpack.c.l.s4 1934713408
          %v1224 = vunpack.c.0.s8 %v1223
          %v1225 = vperm.slane %v1219, %v1224
          %v1227 = vunpack.c.l.s4 1934713408
          %v1228 = vunpack.c.0.s8 %v1227
          %v1229 = vperm.slane %v1221, %v1228
          %v1230 = vrot.slane %v1213, 4
          %v1231 = vsel %vm1182, 0.0, %v1230
          %v1232 = vrot.slane %v1217, 4
          %v1233 = vsel %vm1182, 0.0, %v1232
          %v1234 = vrot.slane %v1225, 4
          %v1235 = vsel %vm1182, 0.0, %v1234
          %v1236 = vrot.slane %v1229, 4
          %v1237 = vsel %vm1182, 0.0, %v1236
          %v1238 = vsel %vm1182, %v1232, %v1213
          %v1240 = vunpack.c.l.s4 1983009808
          %v1241 = vunpack.c.0.s8 %v1240
          %v1242 = vperm.slane %v1238, %v1241
          %v1243 = vrot.slane %v1233, 4
          %v1244 = vsel %vm1182, %v1243, %v1231
          %v1246 = vunpack.c.l.s4 1983009808
          %v1247 = vunpack.c.0.s8 %v1246
          %v1248 = vperm.slane %v1244, %v1247
          %v1249 = vsel %vm1182, %v1236, %v1225
          %v1251 = vunpack.c.l.s4 1983009808
          %v1252 = vunpack.c.0.s8 %v1251
          %v1253 = vperm.slane %v1249, %v1252
          %v1254 = vrot.slane %v1237, 4
          %v1255 = vsel %vm1182, %v1254, %v1235
          %v1257 = vunpack.c.l.s4 1983009808
          %v1258 = vunpack.c.0.s8 %v1257
          %v1259 = vperm.slane %v1255, %v1258
          %v1260 = vrot.slane %v1248, 4
          %v1261 = vsel %vm1182, %v1260, %v1242
          %v1262 = vrot.slane %v1242, 4
          %v1263 = vsel %vm1182, %v1248, %v1262
          %v1265 = vunpack.c.l.s4 1934713408
          %v1266 = vunpack.c.0.s8 %v1265
          %v1267 = vperm.slane %v1261, %v1266
          %v1269 = vunpack.c.l.s4 1934713408
          %v1270 = vunpack.c.0.s8 %v1269
          %v1271 = vperm.slane %v1263, %v1270
          %v1272 = vrot.slane %v1259, 4
          %v1273 = vsel %vm1182, %v1272, %v1253
          %v1274 = vrot.slane %v1253, 4
          %v1275 = vsel %vm1182, %v1259, %v1274
          %v1277 = vunpack.c.l.s4 1934713408
          %v1278 = vunpack.c.0.s8 %v1277
          %v1279 = vperm.slane %v1273, %v1278
          %v1281 = vunpack.c.l.s4 1934713408
          %v1282 = vunpack.c.0.s8 %v1281
          %v1283 = vperm.slane %v1275, %v1282
          %v1284 = vrot.slane %v1279, 4
          %v1285 = vsel %vm1182, %v1284, %v1267
          %v1286 = vrot.slane %v1267, 4
          %v1287 = vsel %vm1182, %v1279, %v1286
          %v1288 = vrot.slane %v1283, 4
          %v1289 = vsel %vm1182, %v1288, %v1271
          %v1290 = vrot.slane %v1271, 4
          %v1291 = vsel %vm1182, %v1283, %v1290
          %1293 = vrot.lane.b32.xlu0 %v1287, 4
          %v1294 = vpop.permute.xlu0 %1293
          %1297 = vrot.lane.b32.xlu0 %v1289, 8
          %v1298 = vpop.permute.xlu0 %1297
          %1301 = vrot.lane.b32.xlu0 %v1291, 12
          %v1302 = vpop.permute.xlu0 %1301
          %vm1304 = vcmask 31744
          %v1305 = vsel %vm1304, %v1285, %v1294
          %vm1306 = vcmask 64512
          %v1307 = vsel %vm1306, %v1305, %v1298
          %vm1308 = vcmask 97280
          %v1309 = vsel %vm1308, %v1307, %v1302
          %v1310 = vld [vmem:[%s3] sm:$0xff]
          %v1311 = vld [vmem:[%s3 + $0x8] sm:$0xff]
          %v1312 = vld [vmem:[%s3 + $0x10] sm:$0x1]
          %v1313 = vperm.slane %v1312, 0
          %vm1314 = vcmask 130048
          %v1316 = vsel %vm1314, %v1309, 0
          %1318 = vmatpush.msra.mxu0 0.0
          %1319 = vmatpush.msra.mxu0 0.0
          %1320 = vmatpush.msra.mxu0 0.0
          %1321 = vmatpush.msra.mxu0 0.0
          %1322 = vmatpush.msra.mxu0 0.0
          %1323 = vmatpush.msra.mxu0 0.0
          %1324 = vmatpush.msra.mxu0 0.0
          %1325 = vmatpush.msra.mxu0 0.0
          %1326 = vmatpush.msra.mxu0 0.0
          %1327 = vmatpush.msra.mxu0 0.0
          %1328 = vmatpush.msra.mxu0 0.0
          %1329 = vmatpush.msra.mxu0 0.0
          %1330 = vmatpush.msra.mxu0 0.0
          %1331 = vmatpush.msra.mxu0 0.0
          %1332 = vmatpush.msra.mxu0 %v1311
          %1333 = vmatpush.msra.mxu0 %v1310
          %1334 = vmatmul.f32.gmra.mxu0 %v1316
          %v1335 = vpop.f32.mrf.mxu0
          %v1336 = vadd.f32 %v1313, %v1335
          %1337 = vdwg.mxu0
          %v1338 = vld [vmem:[%s356] sm:$0xff]
          %v1339 = vadd.f32 %v1338, %v1336
          %v1340 = vsel %vm1314, %v1339, 0.0
          %1341 = vadd.xlane.f32.xlu0 %v1340
          %v1342 = vpop.xlane.xlu0 %1341
          %v1343 = vrcp.pop 16.0
          %v1344 = vmul.f32 16.0, %v1343
          %v1345 = vsub.f32 1.0, %v1344
          %v1346 = vmul.f32 %v1343, %v1345
          %v1347 = vadd.f32 %v1343, %v1346
          %vm1348 = vweird.f32 %v1343
          %v1349 = vsel %vm1348, %v1343, %v1347
          %v1350 = vmul.f32 %v1342, %v1349
          %v1351 = vsub.f32 %v1339, %v1350
          %v1352 = vmul.f32 %v1351, %v1351
          %v1353 = vsel %vm1314, %v1352, 0.0
          %1354 = vadd.xlane.f32.xlu0 %v1353
          %v1355 = vpop.xlane.xlu0 %1354
          %v1356 = vmul.f32 %v1355, %v1349
          %v1357 = vadd.f32 %v1356, 1e-05
          %v1358 = vrsqrt.pop %v1357
          %v1359 = vmul.f32 %v1358, %v1357
          %v1360 = vmul.f32 %v1359, %v1358
          %v1361 = vmul.f32 0.5, %v1360
          %v1362 = vsub.f32 1.5, %v1361
          %v1363 = vmul.f32 %v1358, %v1362
          %vm1364 = vweird.f32 %v1357
          %vm1365 = vweird.f32 %v1358
          %vm1366 = vmor %vm1364, %vm1365
          %v1367 = vsel %vm1366, %v1358, %v1363
          %v1368 = vmul.f32 %v1351, %v1367
          %v1369 = vld [vmem:[#allocation5] sm:$0x1]
          %v1370 = vperm.slane %v1369, 0
          %v1371 = vmul.f32 %v1368, %v1370
          %v1372 = vld [vmem:[#allocation5 + $0x1] sm:$0x1]
          %v1373 = vperm.slane %v1372, 0
          %v1374 = vadd.f32 %v1371, %v1373
          %v1375 = vld [vmem:[%s4] sm:$0xff]
          %v1376 = vld [vmem:[%s4 + $0x8] sm:$0xff]
          %v1377 = vld [vmem:[%s4 + $0x10] sm:$0x1]
          %v1378 = vperm.slane %v1377, 0
          %v1380 = vsel %vm1314, %v1374, 0
          %1382 = vmatpush.msra.mxu0 0.0
          %1383 = vmatpush.msra.mxu0 0.0
          %1384 = vmatpush.msra.mxu0 0.0
          %1385 = vmatpush.msra.mxu0 0.0
          %1386 = vmatpush.msra.mxu0 0.0
          %1387 = vmatpush.msra.mxu0 0.0
          %1388 = vmatpush.msra.mxu0 0.0
          %1389 = vmatpush.msra.mxu0 0.0
          %1390 = vmatpush.msra.mxu0 0.0
          %1391 = vmatpush.msra.mxu0 0.0
          %1392 = vmatpush.msra.mxu0 0.0
          %1393 = vmatpush.msra.mxu0 0.0
          %1394 = vmatpush.msra.mxu0 0.0
          %1395 = vmatpush.msra.mxu0 0.0
          %1396 = vmatpush.msra.mxu0 %v1376
          %1397 = vmatpush.msra.mxu0 %v1375
          %1398 = vmatmul.f32.gmra.mxu0 %v1380
          %v1399 = vpop.f32.mrf.mxu0
          %v1400 = vadd.f32 %v1378, %v1399
          %1401 = vdwg.mxu0
          %v1402 = vmax.f32 %v1400, 0.0
          %v1403 = vld [vmem:[%s5] sm:$0xff]
          %v1404 = vld [vmem:[%s5 + $0x8] sm:$0xff]
          %v1405 = vld [vmem:[%s5 + $0x10] sm:$0xff]
          %v1406 = vld [vmem:[%s5 + $0x18] sm:$0xff]
          %v1407 = vld [vmem:[%s5 + $0x20] sm:$0xff]
          %v1408 = vld [vmem:[%s5 + $0x28] sm:$0xff]
          %v1409 = vld [vmem:[%s5 + $0x30] sm:$0xff]
          %v1410 = vld [vmem:[%s5 + $0x38] sm:$0xff]
          %v1411 = vld [vmem:[%s5 + $0x40] sm:$0x1]
          %v1412 = vperm.slane %v1411, 0
          %vm1413 = vcmask 523264
          %v1415 = vsel %vm1413, %v1402, 0
          %1417 = vmatpush.msra.mxu0 0.0
          %1418 = vmatpush.msra.mxu0 0.0
          %1419 = vmatpush.msra.mxu0 0.0
          %1420 = vmatpush.msra.mxu0 0.0
          %1421 = vmatpush.msra.mxu0 0.0
          %1422 = vmatpush.msra.mxu0 0.0
          %1423 = vmatpush.msra.mxu0 0.0
          %1424 = vmatpush.msra.mxu0 0.0
          %1425 = vmatpush.msra.mxu0 %v1410
          %1426 = vmatpush.msra.mxu0 %v1409
          %1427 = vmatpush.msra.mxu0 %v1408
          %1428 = vmatpush.msra.mxu0 %v1407
          %1429 = vmatpush.msra.mxu0 %v1406
          %1430 = vmatpush.msra.mxu0 %v1405
          %1431 = vmatpush.msra.mxu0 %v1404
          %1432 = vmatpush.msra.mxu0 %v1403
          %1433 = vmatmul.f32.gmra.mxu0 %v1415
          %v1434 = vpop.f32.mrf.mxu0
          %v1435 = vadd.f32 %v1412, %v1434
          %1436 = vdwg.mxu0
          %v1437 = vadd.f32 %v1374, %v1435
          %v1438 = vsel %vm1314, %v1437, 0.0
          %1439 = vadd.xlane.f32.xlu0 %v1438
          %v1440 = vpop.xlane.xlu0 %1439
          %v1441 = vmul.f32 %v1440, %v1349
          %v1442 = vsub.f32 %v1437, %v1441
          %v1443 = vmul.f32 %v1442, %v1442
          %v1444 = vsel %vm1314, %v1443, 0.0
          %1445 = vadd.xlane.f32.xlu0 %v1444
          %v1446 = vpop.xlane.xlu0 %1445
          %v1447 = vmul.f32 %v1446, %v1349
          %v1448 = vadd.f32 %v1447, 1e-05
          %v1449 = vrsqrt.pop %v1448
          %v1450 = vmul.f32 %v1449, %v1448
          %v1451 = vmul.f32 %v1450, %v1449
          %v1452 = vmul.f32 0.5, %v1451
          %v1453 = vsub.f32 1.5, %v1452
          %v1454 = vmul.f32 %v1449, %v1453
          %vm1455 = vweird.f32 %v1448
          %vm1456 = vweird.f32 %v1449
          %vm1457 = vmor %vm1455, %vm1456
          %v1458 = vsel %vm1457, %v1449, %v1454
          %v1459 = vmul.f32 %v1442, %v1458
          %v1460 = vld [vmem:[#allocation5 + $0x2] sm:$0x1]
          %v1461 = vperm.slane %v1460, 0
          %v1462 = vmul.f32 %v1459, %v1461
          %v1463 = vld [vmem:[#allocation5 + $0x3] sm:$0x1]
          %v1464 = vperm.slane %v1463, 0
          %v1465 = vadd.f32 %v1462, %v1464
          %v1466 = vld [vmem:[#allocation5 + $0x4] sm:$0x1]
          %v1467 = vperm.slane %v1466, 0
          %v1468 = vmul.f32 %v1465, %v1467
          %v1469 = vsel %vm1314, %v1468, 0.0
          %1470 = vadd.xlane.f32.xlu0 %v1469
          %v1471 = vpop.xlane.xlu0 %1470
          %v1472 = vld [vmem:[#allocation5 + $0x5] sm:$0x1]
          %v1473 = vperm.slane %v1472, 0
          %v1474 = vadd.f32 %v1471, %v1473
          %vm1475 = vcmask 7168
          %1476 = vst.msk [vmem:[%s376] sm:$0xff] %vm1475, %v1474
        $region64: #{tpu_custom_call.1} parent=47 // pred_fallthru
          _
        %p1477 = scmp.lt.s32.totalorder %s24, 1
        %s1478 = scalar_select %p1477, %s24, 1
        %p1479 = scmp.lt.s32.totalorder %s25, 1
        %s1480 = scalar_select %p1479, %s25, 1
        %s1481 = smul.addr %s1478, 2
        %s1482 = sadd.s32 %s1480, %s1481
        %s1483 = smul.addr %s1482, 8
        %s1484 = scalar_lea.vmem %s7, %s1483
        // Predicated region
        $region65: #{tpu_custom_call.1} parent=47 // pred_check
          %p1485 = pneg %p223
        $region66: #{tpu_custom_call.1} parent=47 // pred_check_branch
          %1487 = sbr.rel (%p1485) target = $region68
        $region67: #{tpu_custom_call.1} parent=47 // pred_region
          _
        $region68: #{tpu_custom_call.1} parent=47 // pred_fallthru
          _
      $region48: #{tpu_custom_call.1} parent=5 // pred_fallthru
        _
      %p1488 = scmp.le.s32.totalorder 2, %s14
      // Predicated region
      $region69: #{tpu_custom_call.1} parent=5 // pred_check
        %p1489 = pneg %p1488
      $region70: #{tpu_custom_call.1} parent=5 // pred_check_branch
        %1491 = sbr.rel (%p1489) target = $region72
      $region71: #{tpu_custom_call.1} parent=5 // pred_region
        %s1492 = ssub.s32 %s14, 2
        // Predicated region
        $region73: #{tpu_custom_call.1} parent=71 // pred_check
          %p1493 = pneg %p229
        $region74: #{tpu_custom_call.1} parent=71 // pred_check_branch
          %1495 = sbr.rel (%p1493) target = $region76
        $region75: #{tpu_custom_call.1} parent=71 // pred_region
          %p1496 = scmp.lt.s32.totalorder %s27, 1
          %s1497 = scalar_select %p1496, %s27, 1
          %p1498 = scmp.lt.s32.totalorder %s28, 1
          %s1499 = scalar_select %p1498, %s28, 1
          %s1500 = smul.addr %s1497, 2
          %s1501 = sadd.s32 %s1499, %s1500
          %s1502 = smul.addr %s1501, 8
          %s1503 = scalar_lea.vmem %s7, %s1502
        $region76: #{tpu_custom_call.1} parent=71 // pred_fallthru
          _
      $region72: #{tpu_custom_call.1} parent=5 // pred_fallthru
        _
    $region6: #{tpu_custom_call.1} parent=1 // loop_footer
      %s18 = sadd.s32 1, %s14
    $region7: #{tpu_custom_call.1} parent=1 // loop_footer_branch
      %13 = sbr.rel target = $region3
    $region8: #{tpu_custom_call.1} parent=1 // loop_exit
      _
    %1504 = vsyncpa [#allocation6], 1
    %s1505 = scalar_lea.sflag [#allocation6], 1
    %1506 = vsyncpa %s1505, 1

</llo_original>
